<compile_context>
chip_gen: v7x
topology: tpu7x:2x2x1
jax: 0.10.0
libtpu: 0.0.40
codegen_flags: <defaults>
</compile_context>

<pallas_src>
import functools
from collections import namedtuple

import jax
import jax.numpy as jnp
from jax.experimental import pallas as pl
from jax.experimental.pallas import tpu as pltpu

TransformerEncoderOutput = namedtuple("TransformerEncoderOutput", ("output", "src_mask"))

LN_EPS = 1e-12  # baseline uses nn.LayerNorm(d_model, eps=1e-12)


def _layernorm(x, g, b):
    mu = jnp.mean(x, axis=-1, keepdims=True)
    xc = x - mu
    var = jnp.mean(xc * xc, axis=-1, keepdims=True)
    return xc * jax.lax.rsqrt(var + LN_EPS) * g + b


def _encoder_kernel(*refs, num_heads, has_proj, out_slab):
    # refs = (x, mask_bias, [wp, bp,] wqkv, bqkv, wo, bo,
    #         ln1g, ln1b, ln2g, ln2b, w1, b1, w2, b2, lnfg, lnfb, out)
    x_ref, bias_ref = refs[0], refs[1]
    o_ref = refs[-1]
    w = refs[2:-1]
    if has_proj:
        wp_ref, bp_ref = w[0], w[1]
        w = w[2:]
    (wqkv_ref, bqkv_ref, wo_ref, bo_ref,
     ln1g_ref, ln1b_ref, ln2g_ref, ln2b_ref,
     w1_ref, b1_ref, w2_ref, b2_ref,
     lnfg_ref, lnfb_ref) = w

    bt, T = bias_ref.shape            # batch-block size, sequence length (static)
    H = num_heads
    bias = bias_ref[...]              # (bt, T) f32 additive key-mask bias (0 or -1e9)
    x = x_ref[...]                    # (bt*T, dsz) f32 residual stream

    if has_proj:                      # only emitted when hsz != dsz
        x = jnp.dot(x.astype(jnp.bfloat16), wp_ref[...],
                    preferred_element_type=jnp.float32) + bp_ref[...]

    N = x.shape[0]                    # bt * T tokens in this block
    D = wo_ref.shape[1]               # hsz
    dh = D // H

    # ---------------- self-attention sub-layer (pre-LN) ----------------
    # 1/sqrt(dh) is already folded into the Q columns of wqkv/bqkv (wrapper-side).
    h = _layernorm(x, ln1g_ref[...], ln1b_ref[...]).astype(jnp.bfloat16)
    qkv = jnp.dot(h, wqkv_ref[...], preferred_element_type=jnp.float32) + bqkv_ref[...]
    qkv = qkv.astype(jnp.bfloat16)    # (N, 3*D)

    # Head-major split done ONCE from the fused QKV output: (3*H*bt, T, dh).
    parts = [qkv[:, j * D + i * dh:j * D + (i + 1) * dh].reshape(bt, T, dh)
             for j in range(3) for i in range(H)]
    qkvh = jnp.concatenate(parts, axis=0)
    qh = qkvh[:H * bt]
    kh = qkvh[H * bt:2 * H * bt]
    vh = qkvh[2 * H * bt:]

    # Batched scores for all heads; masked softmax with a broadcast bias add
    # (leading-dim view (H, bt, T, T) is free; no H-way bias concat).
    s = jnp.einsum("gqd,gkd->gqk", qh, kh,
                   preferred_element_type=jnp.float32)            # (H*bt, T, T) f32
    s = s.reshape(H, bt, T, T) + bias[None, :, None, :]
    s = s - jnp.max(s, axis=-1, keepdims=True)
    p = jnp.exp(s)
    denom = jnp.sum(p, axis=-1, keepdims=True)
    p = (p * pl.reciprocal(denom, approx=True)).astype(jnp.bfloat16)
    ctx = jnp.einsum("gqk,gkd->gqd", p.reshape(H * bt, T, T), vh,
                     preferred_element_type=jnp.float32)          # (H*bt, T, dh) f32

    # Lane-concat the heads once, then ONE (N, D) @ (D, D) output projection (K = D).
    ctx_lane = jnp.concatenate(
        [ctx[i * bt:(i + 1) * bt].reshape(N, dh) for i in range(H)],
        axis=-1).astype(jnp.bfloat16)                             # (N, D) bf16
    attn = jnp.dot(ctx_lane, wo_ref[...],
                   preferred_element_type=jnp.float32) + bo_ref[...]
    x = x + attn                      # dropout == identity (eval)

    # ---------------- feed-forward sub-layer (pre-LN) ----------------
    h2 = _layernorm(x, ln2g_ref[...], ln2b_ref[...]).astype(jnp.bfloat16)
    f = jnp.dot(h2, w1_ref[...], preferred_element_type=jnp.float32) + b1_ref[...]
    f = jnp.maximum(f, 0.0).astype(jnp.bfloat16)
    f = jnp.dot(f, w2_ref[...], preferred_element_type=jnp.float32) + b2_ref[...]
    x = x + f                         # dropout == identity (eval)

    # ---------------- final LayerNorm + store ----------------
    out = _layernorm(x, lnfg_ref[...], lnfb_ref[...])             # (N, D) f32
    if out_slab:
        # Lane-dense (bt, T*D) slab via a single row-major reshape (same data mapping).
        o_ref[...] = out.reshape(bt, T * D)
    else:
        # hsz already a lane multiple: store rows directly.
        o_ref[...] = out


def _tpu_is_v7x():
    try:
        return "v7" in jax.devices()[0].device_kind.lower()
    except Exception:
        return False


def _vmem_limit_bytes():
    # v7x has 64 MiB VMEM per TensorCore; v5e/v6e have 128 MiB.
    return (48 if _tpu_is_v7x() else 64) * 1024 * 1024


def _block_vmem_bytes(bt, T, dsz, hsz, d_ff, H):
    """Conservative per-block VMEM estimate (bytes)."""
    N = bt * T
    f32, bf16 = 4, 2
    io = 2 * N * dsz * f32 + 2 * N * hsz * f32 + 2 * bt * T * f32       # double-buffered tiles
    weights = bf16 * (3 * hsz * hsz + hsz * hsz + 2 * hsz * d_ff + dsz * hsz) \
        + f32 * (3 * hsz + 8 * hsz + 2 * d_ff)
    attn = N * 3 * hsz * (f32 + bf16) + 3 * N * hsz * bf16 \
        + 2 * H * N * T * f32 + N * hsz * (f32 + bf16)
    ffn = N * d_ff * (f32 + bf16)
    temps = 6 * N * hsz * f32
    return io + weights + attn + ffn + temps


def _pick_block_b(B, T, dsz, hsz, d_ff, H, budget_bytes, want_multi_step):
    """Largest batch-block fitting the VMEM budget; bt divides B and bt==B or bt%8==0."""
    cands = [d for d in range(1, B + 1) if B % d == 0 and (d == B or d % 8 == 0)]
    fits = [d for d in cands
            if _block_vmem_bytes(d, T, dsz, hsz, d_ff, H) <= budget_bytes] or cands[:1]
    if want_multi_step:                 # v7x: keep >= 2 grid steps so both TCs get work
        multi = [d for d in fits if B // d >= 2]
        if multi:
            fits = multi
    big = [d for d in fits if d * T >= 1024]   # amortize ~0.35us/step + fill the MXU
    return big[0] if big else fits[-1]


def init_params(key, dsz, hsz, num_heads, d_ff=None):
    d_ff = 4 * hsz if d_ff is None else d_ff
    s = 0.02
    ks = jax.random.split(key, 4)
    p = {}
    if hsz != dsz:
        p["wp"] = s * jax.random.normal(ks[0], (dsz, hsz), jnp.float32)
        p["bp"] = jnp.zeros((1, hsz), jnp.float32)
    for name, k in zip(["wq", "wk", "wv", "wo"], jax.random.split(ks[1], 4)):
        p[name] = s * jax.random.normal(k, (hsz, hsz), jnp.float32)
    for name in ["bq", "bk", "bv", "bo"]:
        p[name] = jnp.zeros((1, hsz), jnp.float32)
    p["w1"] = s * jax.random.normal(ks[2], (hsz, d_ff), jnp.float32)
    p["b1"] = jnp.zeros((1, d_ff), jnp.float32)
    p["w2"] = s * jax.random.normal(ks[3], (d_ff, hsz), jnp.float32)
    p["b2"] = jnp.zeros((1, hsz), jnp.float32)
    for name in ["ln1g", "ln2g", "lnfg"]:
        p[name] = jnp.ones((1, hsz), jnp.float32)
    for name in ["ln1b", "ln2b", "lnfb"]:
        p[name] = jnp.zeros((1, hsz), jnp.float32)
    return p


def transformer_encoder_wrapper(bth, lengths, params, num_heads=4, block_b=None,
                                single_buffer_weights=True):
    B, T, dsz = bth.shape
    hsz = params["wq"].shape[0]
    d_ff = params["w1"].shape[1]
    has_proj = "wp" in params
    H = num_heads
    dh = hsz // H
    bf16 = jnp.bfloat16

    # sequence_mask(lengths, T).type_as(lengths) -- cheap glue, plain JAX.
    src_mask = (jnp.arange(T, dtype=lengths.dtype)[None, :]
                < lengths[:, None]).astype(lengths.dtype)
    # Additive attention bias over the key axis (== masked_fill(mask == 0, -1e9)).
    mask_bias = jnp.where(src_mask == 0, jnp.float32(-1e9), jnp.float32(0.0))     # (B, T)

    # Fuse Q/K/V into one matmul; fold 1/sqrt(dh) into the Q columns (weight AND bias).
    scale = jnp.float32(1.0 / (dh ** 0.5))
    wqkv = jnp.concatenate([params["wq"] * scale, params["wk"], params["wv"]],
                           axis=1).astype(bf16)                    # (hsz, 3*hsz)
    bqkv = jnp.concatenate([params["bq"] * scale, params["bk"], params["bv"]],
                           axis=1).astype(jnp.float32)             # (1, 3*hsz)

    vmem_limit = _vmem_limit_bytes()
    if block_b is None:
        bt = _pick_block_b(B, T, dsz, hsz, d_ff, H,
                           budget_bytes=int(0.8 * vmem_limit),
                           want_multi_step=_tpu_is_v7x())
    else:
        bt = block_b
    grid = (B // bt,)

    x2 = bth.reshape(B * T, dsz).astype(jnp.float32)
    out_slab = (hsz % 128) != 0        # pack lane-dense slab only when hsz is not lane-dense

    def build_and_run(single_buffer, slab):
        mode = pl.Buffered(1) if (single_buffer and hasattr(pl, "Buffered")) else None

        def const_spec(shape):
            nd = len(shape)
            idx = lambda b, _nd=nd: (0,) * _nd
            if mode is not None:
                try:
                    # Grid-invariant weights: single-buffer (constant index_map => no DMA to hide).
                    return pl.BlockSpec(shape, idx, pipeline_mode=mode)
                except TypeError:
                    pass
            return pl.BlockSpec(shape, idx)

        in_specs = [
            pl.BlockSpec((bt * T, dsz), lambda b: (b, 0)),   # token block (flattened 2-D)
            pl.BlockSpec((bt, T), lambda b: (b, 0)),         # additive key-mask bias block
        ]
        args = [x2, mask_bias]

        if has_proj:
            in_specs += [const_spec((dsz, hsz)), const_spec((1, hsz))]
            args += [params["wp"].astype(bf16), params["bp"].astype(jnp.float32)]

        in_specs += [const_spec((hsz, 3 * hsz)), const_spec((1, 3 * hsz)),
                     const_spec((hsz, hsz)), const_spec((1, hsz))]
        args += [wqkv, bqkv, params["wo"].astype(bf16), params["bo"].astype(jnp.float32)]

        in_specs += [const_spec((1, hsz))] * 4
        args += [params["ln1g"], params["ln1b"], params["ln2g"], params["ln2b"]]

        in_specs += [const_spec((hsz, d_ff)), const_spec((1, d_ff)),
                     const_spec((d_ff, hsz)), const_spec((1, hsz))]
        args += [params["w1"].astype(bf16), params["b1"],
                 params["w2"].astype(bf16), params["b2"]]

        in_specs += [const_spec((1, hsz)), const_spec((1, hsz))]
        args += [params["lnfg"], params["lnfb"]]

        if slab:
            out_shape = jax.ShapeDtypeStruct((B, T * hsz), jnp.float32)
            out_specs = pl.BlockSpec((bt, T * hsz), lambda b: (b, 0))
        else:
            out_shape = jax.ShapeDtypeStruct((B * T, hsz), jnp.float32)
            out_specs = pl.BlockSpec((bt * T, hsz), lambda b: (b, 0))

        return pl.pallas_call(
            functools.partial(_encoder_kernel, num_heads=H, has_proj=has_proj,
                              out_slab=slab),
            out_shape=out_shape,
            grid=grid,
            in_specs=in_specs,
            out_specs=out_specs,
            compiler_params=pltpu.CompilerParams(
                dimension_semantics=("parallel",),   # independent batch blocks (2 TCs on v7x)
                vmem_limit_bytes=vmem_limit,
            ),
        )(*args)

    try:
        out2 = build_and_run(single_buffer_weights, out_slab)
    except Exception:
        # Conservative fallback: default double-buffered specs + plain row-major output.
        out2 = build_and_run(False, False)

    output = out2.reshape(B, T, hsz)
    return TransformerEncoderOutput(output=output, src_mask=src_mask)


if __name__ == "__main__":
    key = jax.random.PRNGKey(0)
    k_x, k_p = jax.random.split(key)

    B, T, dsz = 2, 8, 32
    hsz = dsz          # default: hsz=None -> hsz=dsz -> identity projection (skipped at trace time)
    num_heads = 4      # layers=1 (module default)

    bth = jax.random.normal(k_x, (B, T, dsz), jnp.float32)
    lengths = jnp.array([8, 5], dtype=jnp.int32)

    params = init_params(k_p, dsz, hsz, num_heads)

    result = transformer_encoder_wrapper(bth, lengths, params, num_heads=num_heads)
    jax.block_until_ready(result.output)
    jax.block_until_ready(result.src_mask)

    assert result.output.shape == (B, T, hsz)
    assert result.src_mask.shape == (B, T)
    assert bool(jnp.all(jnp.isfinite(result.output)))
    print("KERNEL_OK")
</pallas_src>

<mosaic_0001>
module attributes {stable_mosaic.version = 11 : i64} {
  func.func @_encoder_kernel(%arg0: i32, %arg1: memref<16x32xf32, #tpu.memory_space<vmem>>, %arg2: memref<2x8xf32, #tpu.memory_space<vmem>>, %arg3: memref<32x96xbf16, #tpu.memory_space<vmem>>, %arg4: memref<1x96xf32, #tpu.memory_space<vmem>>, %arg5: memref<32x32xbf16, #tpu.memory_space<vmem>>, %arg6: memref<1x32xf32, #tpu.memory_space<vmem>>, %arg7: memref<1x32xf32, #tpu.memory_space<vmem>>, %arg8: memref<1x32xf32, #tpu.memory_space<vmem>>, %arg9: memref<1x32xf32, #tpu.memory_space<vmem>>, %arg10: memref<1x32xf32, #tpu.memory_space<vmem>>, %arg11: memref<32x128xbf16, #tpu.memory_space<vmem>>, %arg12: memref<1x128xf32, #tpu.memory_space<vmem>>, %arg13: memref<128x32xbf16, #tpu.memory_space<vmem>>, %arg14: memref<1x32xf32, #tpu.memory_space<vmem>>, %arg15: memref<1x32xf32, #tpu.memory_space<vmem>>, %arg16: memref<1x32xf32, #tpu.memory_space<vmem>>, %arg17: memref<2x256xf32, #tpu.memory_space<vmem>>) attributes {dimension_semantics = [#tpu.dimension_semantics<parallel>], iteration_bounds = array<i64: 1>, scalar_prefetch = 0 : i64, scratch_operands = 0 : i64, tpu.core_type = #tpu.core_type<tc>, window_params = [{transform_indices = @transform_0, window_bounds = array<i64: 16, 32>}, {transform_indices = @transform_1, window_bounds = array<i64: 2, 8>}, {pipeline_mode = #tpu.pipeline_mode<synchronous>, transform_indices = @transform_2, window_bounds = array<i64: 32, 96>}, {pipeline_mode = #tpu.pipeline_mode<synchronous>, transform_indices = @transform_3, window_bounds = array<i64: 1, 96>}, {pipeline_mode = #tpu.pipeline_mode<synchronous>, transform_indices = @transform_4, window_bounds = array<i64: 32, 32>}, {pipeline_mode = #tpu.pipeline_mode<synchronous>, transform_indices = @transform_5, window_bounds = array<i64: 1, 32>}, {pipeline_mode = #tpu.pipeline_mode<synchronous>, transform_indices = @transform_6, window_bounds = array<i64: 1, 32>}, {pipeline_mode = #tpu.pipeline_mode<synchronous>, transform_indices = @transform_7, window_bounds = array<i64: 1, 32>}, {pipeline_mode = #tpu.pipeline_mode<synchronous>, transform_indices = @transform_8, window_bounds = array<i64: 1, 32>}, {pipeline_mode = #tpu.pipeline_mode<synchronous>, transform_indices = @transform_9, window_bounds = array<i64: 1, 32>}, {pipeline_mode = #tpu.pipeline_mode<synchronous>, transform_indices = @transform_10, window_bounds = array<i64: 32, 128>}, {pipeline_mode = #tpu.pipeline_mode<synchronous>, transform_indices = @transform_11, window_bounds = array<i64: 1, 128>}, {pipeline_mode = #tpu.pipeline_mode<synchronous>, transform_indices = @transform_12, window_bounds = array<i64: 128, 32>}, {pipeline_mode = #tpu.pipeline_mode<synchronous>, transform_indices = @transform_13, window_bounds = array<i64: 1, 32>}, {pipeline_mode = #tpu.pipeline_mode<synchronous>, transform_indices = @transform_14, window_bounds = array<i64: 1, 32>}, {pipeline_mode = #tpu.pipeline_mode<synchronous>, transform_indices = @transform_15, window_bounds = array<i64: 1, 32>}, {transform_indices = @transform_16, window_bounds = array<i64: 2, 256>}]} {
    %c0 = arith.constant 0 : index
    %c0_0 = arith.constant 0 : index
    %0 = vector.load %arg2[%c0, %c0_0] : memref<2x8xf32, #tpu.memory_space<vmem>>, vector<2x8xf32>
    %c0_1 = arith.constant 0 : index
    %c0_2 = arith.constant 0 : index
    %1 = vector.load %arg1[%c0_1, %c0_2] : memref<16x32xf32, #tpu.memory_space<vmem>>, vector<16x32xf32>
    %c0_3 = arith.constant 0 : index
    %c0_4 = arith.constant 0 : index
    %2 = vector.load %arg7[%c0_3, %c0_4] : memref<1x32xf32, #tpu.memory_space<vmem>>, vector<1x32xf32>
    %c0_5 = arith.constant 0 : index
    %c0_6 = arith.constant 0 : index
    %3 = vector.load %arg8[%c0_5, %c0_6] : memref<1x32xf32, #tpu.memory_space<vmem>>, vector<1x32xf32>
    %cst = arith.constant dense<0.000000e+00> : vector<16xf32>
    %4 = vector.multi_reduction <add>, %1, %cst [1] : vector<16x32xf32> to vector<16xf32>
    %5 = vector.shape_cast %4 : vector<16xf32> to vector<16x1xf32>
    %cst_7 = arith.constant 3.200000e+01 : f32
    %6 = vector.broadcast %cst_7 : f32 to vector<16x1xf32>
    %7 = arith.divf %5, %6 : vector<16x1xf32>
    %8 = vector.broadcast %7 : vector<16x1xf32> to vector<16x32xf32>
    %9 = arith.subf %1, %8 : vector<16x32xf32>
    %10 = arith.mulf %9, %9 : vector<16x32xf32>
    %cst_8 = arith.constant dense<0.000000e+00> : vector<16xf32>
    %11 = vector.multi_reduction <add>, %10, %cst_8 [1] : vector<16x32xf32> to vector<16xf32>
    %12 = vector.shape_cast %11 : vector<16xf32> to vector<16x1xf32>
    %cst_9 = arith.constant 3.200000e+01 : f32
    %13 = vector.broadcast %cst_9 : f32 to vector<16x1xf32>
    %14 = arith.divf %12, %13 : vector<16x1xf32>
    %cst_10 = arith.constant 9.99999996E-13 : f32
    %15 = vector.broadcast %cst_10 : f32 to vector<16x1xf32>
    %16 = arith.addf %14, %15 : vector<16x1xf32>
    %17 = math.rsqrt %16 : vector<16x1xf32>
    %18 = vector.broadcast %17 : vector<16x1xf32> to vector<16x32xf32>
    %19 = arith.mulf %9, %18 : vector<16x32xf32>
    %20 = vector.broadcast %2 : vector<1x32xf32> to vector<16x32xf32>
    %21 = arith.mulf %19, %20 : vector<16x32xf32>
    %22 = vector.broadcast %3 : vector<1x32xf32> to vector<16x32xf32>
    %23 = arith.addf %21, %22 : vector<16x32xf32>
    %24 = arith.truncf %23 : vector<16x32xf32> to vector<16x32xbf16>
    %c0_11 = arith.constant 0 : index
    %c0_12 = arith.constant 0 : index
    %25 = vector.load %arg3[%c0_11, %c0_12] : memref<32x96xbf16, #tpu.memory_space<vmem>>, vector<32x96xbf16>
    %cst_13 = arith.constant dense<0.000000e+00> : vector<16x96xf32>
    %26 = tpu.matmul %24, %25, %cst_13 {dimension_numbers = #tpu.dot_dimension_numbers<[1], [0], [0], [1], [0, 0, 1, 1], [], []>} : vector<16x32xbf16>, vector<32x96xbf16>, vector<16x96xf32> -> vector<16x96xf32>
    %c0_14 = arith.constant 0 : index
    %c0_15 = arith.constant 0 : index
    %27 = vector.load %arg4[%c0_14, %c0_15] : memref<1x96xf32, #tpu.memory_space<vmem>>, vector<1x96xf32>
    %28 = vector.broadcast %27 : vector<1x96xf32> to vector<16x96xf32>
    %29 = arith.addf %26, %28 : vector<16x96xf32>
    %30 = arith.truncf %29 : vector<16x96xf32> to vector<16x96xbf16>
    %31 = vector.extract_strided_slice %30 {offsets = [0, 0], sizes = [16, 8], strides = [1, 1]} : vector<16x96xbf16> to vector<16x8xbf16>
    %32 = vector.shape_cast %31 : vector<16x8xbf16> to vector<2x8x8xbf16>
    %33 = vector.extract_strided_slice %30 {offsets = [0, 8], sizes = [16, 8], strides = [1, 1]} : vector<16x96xbf16> to vector<16x8xbf16>
    %34 = vector.shape_cast %33 : vector<16x8xbf16> to vector<2x8x8xbf16>
    %35 = vector.extract_strided_slice %30 {offsets = [0, 16], sizes = [16, 8], strides = [1, 1]} : vector<16x96xbf16> to vector<16x8xbf16>
    %36 = vector.shape_cast %35 : vector<16x8xbf16> to vector<2x8x8xbf16>
    %37 = vector.extract_strided_slice %30 {offsets = [0, 24], sizes = [16, 8], strides = [1, 1]} : vector<16x96xbf16> to vector<16x8xbf16>
    %38 = vector.shape_cast %37 : vector<16x8xbf16> to vector<2x8x8xbf16>
    %39 = vector.extract_strided_slice %30 {offsets = [0, 32], sizes = [16, 8], strides = [1, 1]} : vector<16x96xbf16> to vector<16x8xbf16>
    %40 = vector.shape_cast %39 : vector<16x8xbf16> to vector<2x8x8xbf16>
    %41 = vector.extract_strided_slice %30 {offsets = [0, 40], sizes = [16, 8], strides = [1, 1]} : vector<16x96xbf16> to vector<16x8xbf16>
    %42 = vector.shape_cast %41 : vector<16x8xbf16> to vector<2x8x8xbf16>
    %43 = vector.extract_strided_slice %30 {offsets = [0, 48], sizes = [16, 8], strides = [1, 1]} : vector<16x96xbf16> to vector<16x8xbf16>
    %44 = vector.shape_cast %43 : vector<16x8xbf16> to vector<2x8x8xbf16>
    %45 = vector.extract_strided_slice %30 {offsets = [0, 56], sizes = [16, 8], strides = [1, 1]} : vector<16x96xbf16> to vector<16x8xbf16>
    %46 = vector.shape_cast %45 : vector<16x8xbf16> to vector<2x8x8xbf16>
    %47 = vector.extract_strided_slice %30 {offsets = [0, 64], sizes = [16, 8], strides = [1, 1]} : vector<16x96xbf16> to vector<16x8xbf16>
    %48 = vector.shape_cast %47 : vector<16x8xbf16> to vector<2x8x8xbf16>
    %49 = vector.extract_strided_slice %30 {offsets = [0, 72], sizes = [16, 8], strides = [1, 1]} : vector<16x96xbf16> to vector<16x8xbf16>
    %50 = vector.shape_cast %49 : vector<16x8xbf16> to vector<2x8x8xbf16>
    %51 = vector.extract_strided_slice %30 {offsets = [0, 80], sizes = [16, 8], strides = [1, 1]} : vector<16x96xbf16> to vector<16x8xbf16>
    %52 = vector.shape_cast %51 : vector<16x8xbf16> to vector<2x8x8xbf16>
    %53 = vector.extract_strided_slice %30 {offsets = [0, 88], sizes = [16, 8], strides = [1, 1]} : vector<16x96xbf16> to vector<16x8xbf16>
    %54 = vector.shape_cast %53 : vector<16x8xbf16> to vector<2x8x8xbf16>
    %55 = tpu.concatenate %32, %34, %36, %38, %40, %42, %44, %46, %48, %50, %52, %54 in 0 : vector<2x8x8xbf16>, vector<2x8x8xbf16>, vector<2x8x8xbf16>, vector<2x8x8xbf16>, vector<2x8x8xbf16>, vector<2x8x8xbf16>, vector<2x8x8xbf16>, vector<2x8x8xbf16>, vector<2x8x8xbf16>, vector<2x8x8xbf16>, vector<2x8x8xbf16>, vector<2x8x8xbf16> -> vector<24x8x8xbf16>
    %56 = vector.extract_strided_slice %55 {offsets = [0, 0, 0], sizes = [8, 8, 8], strides = [1, 1, 1]} : vector<24x8x8xbf16> to vector<8x8x8xbf16>
    %57 = vector.extract_strided_slice %55 {offsets = [8, 0, 0], sizes = [8, 8, 8], strides = [1, 1, 1]} : vector<24x8x8xbf16> to vector<8x8x8xbf16>
    %58 = vector.extract_strided_slice %55 {offsets = [16, 0, 0], sizes = [8, 8, 8], strides = [1, 1, 1]} : vector<24x8x8xbf16> to vector<8x8x8xbf16>
    "tpu.trace_start"() <{level = 10 : i32, message = "gqd,gkd->gqk"}> : () -> ()
    %cst_16 = arith.constant dense<0.000000e+00> : vector<8x8x8xf32>
    %59 = tpu.matmul %56, %57, %cst_16 {dimension_numbers = #tpu.dot_dimension_numbers<[2], [2], [1], [1], [0, 0, 0, 1, 1, 1], [0], [0]>} : vector<8x8x8xbf16>, vector<8x8x8xbf16>, vector<8x8x8xf32> -> vector<8x8x8xf32>
    "tpu.trace_stop"() : () -> ()
    %60 = vector.shape_cast %59 : vector<8x8x8xf32> to vector<4x2x8x8xf32>
    %61 = vector.shape_cast %0 : vector<2x8xf32> to vector<1x2x1x8xf32>
    %62 = vector.broadcast %61 : vector<1x2x1x8xf32> to vector<4x2x8x8xf32>
    %63 = arith.addf %60, %62 : vector<4x2x8x8xf32>
    %cst_17 = arith.constant dense<0xFF800000> : vector<4x2x8xf32>
    %64 = vector.multi_reduction <maximumf>, %63, %cst_17 [3] : vector<4x2x8x8xf32> to vector<4x2x8xf32>
    %65 = vector.shape_cast %64 : vector<4x2x8xf32> to vector<4x2x8x1xf32>
    %66 = vector.broadcast %65 : vector<4x2x8x1xf32> to vector<4x2x8x8xf32>
    %67 = arith.subf %63, %66 : vector<4x2x8x8xf32>
    %68 = math.exp %67 : vector<4x2x8x8xf32>
    %cst_18 = arith.constant dense<0.000000e+00> : vector<4x2x8xf32>
    %69 = vector.multi_reduction <add>, %68, %cst_18 [3] : vector<4x2x8x8xf32> to vector<4x2x8xf32>
    %70 = vector.shape_cast %69 : vector<4x2x8xf32> to vector<4x2x8x1xf32>
    %71 = tpu.reciprocal %70 {approx = true} : vector<4x2x8x1xf32> -> vector<4x2x8x1xf32>
    %72 = vector.broadcast %71 : vector<4x2x8x1xf32> to vector<4x2x8x8xf32>
    %73 = arith.mulf %68, %72 : vector<4x2x8x8xf32>
    %74 = arith.truncf %73 : vector<4x2x8x8xf32> to vector<4x2x8x8xbf16>
    %75 = vector.shape_cast %74 : vector<4x2x8x8xbf16> to vector<8x8x8xbf16>
    "tpu.trace_start"() <{level = 10 : i32, message = "gqk,gkd->gqd"}> : () -> ()
    %cst_19 = arith.constant dense<0.000000e+00> : vector<8x8x8xf32>
    %76 = tpu.matmul %75, %58, %cst_19 {dimension_numbers = #tpu.dot_dimension_numbers<[2], [1], [1], [2], [0, 0, 0, 1, 1, 2], [0], [0]>} : vector<8x8x8xbf16>, vector<8x8x8xbf16>, vector<8x8x8xf32> -> vector<8x8x8xf32>
    "tpu.trace_stop"() : () -> ()
    %77 = vector.extract_strided_slice %76 {offsets = [0, 0, 0], sizes = [2, 8, 8], strides = [1, 1, 1]} : vector<8x8x8xf32> to vector<2x8x8xf32>
    %78 = vector.shape_cast %77 : vector<2x8x8xf32> to vector<16x8xf32>
    %79 = vector.extract_strided_slice %76 {offsets = [2, 0, 0], sizes = [2, 8, 8], strides = [1, 1, 1]} : vector<8x8x8xf32> to vector<2x8x8xf32>
    %80 = vector.shape_cast %79 : vector<2x8x8xf32> to vector<16x8xf32>
    %81 = vector.extract_strided_slice %76 {offsets = [4, 0, 0], sizes = [2, 8, 8], strides = [1, 1, 1]} : vector<8x8x8xf32> to vector<2x8x8xf32>
    %82 = vector.shape_cast %81 : vector<2x8x8xf32> to vector<16x8xf32>
    %83 = vector.extract_strided_slice %76 {offsets = [6, 0, 0], sizes = [2, 8, 8], strides = [1, 1, 1]} : vector<8x8x8xf32> to vector<2x8x8xf32>
    %84 = vector.shape_cast %83 : vector<2x8x8xf32> to vector<16x8xf32>
    %85 = tpu.concatenate %78, %80, %82, %84 in 1 : vector<16x8xf32>, vector<16x8xf32>, vector<16x8xf32>, vector<16x8xf32> -> vector<16x32xf32>
    %86 = arith.truncf %85 : vector<16x32xf32> to vector<16x32xbf16>
    %c0_20 = arith.constant 0 : index
    %c0_21 = arith.constant 0 : index
    %87 = vector.load %arg5[%c0_20, %c0_21] : memref<32x32xbf16, #tpu.memory_space<vmem>>, vector<32x32xbf16>
    %cst_22 = arith.constant dense<0.000000e+00> : vector<16x32xf32>
    %88 = tpu.matmul %86, %87, %cst_22 {dimension_numbers = #tpu.dot_dimension_numbers<[1], [0], [0], [1], [0, 0, 1, 1], [], []>} : vector<16x32xbf16>, vector<32x32xbf16>, vector<16x32xf32> -> vector<16x32xf32>
    %c0_23 = arith.constant 0 : index
    %c0_24 = arith.constant 0 : index
    %89 = vector.load %arg6[%c0_23, %c0_24] : memref<1x32xf32, #tpu.memory_space<vmem>>, vector<1x32xf32>
    %90 = vector.broadcast %89 : vector<1x32xf32> to vector<16x32xf32>
    %91 = arith.addf %88, %90 : vector<16x32xf32>
    %92 = arith.addf %1, %91 : vector<16x32xf32>
    %c0_25 = arith.constant 0 : index
    %c0_26 = arith.constant 0 : index
    %93 = vector.load %arg9[%c0_25, %c0_26] : memref<1x32xf32, #tpu.memory_space<vmem>>, vector<1x32xf32>
    %c0_27 = arith.constant 0 : index
    %c0_28 = arith.constant 0 : index
    %94 = vector.load %arg10[%c0_27, %c0_28] : memref<1x32xf32, #tpu.memory_space<vmem>>, vector<1x32xf32>
    %cst_29 = arith.constant dense<0.000000e+00> : vector<16xf32>
    %95 = vector.multi_reduction <add>, %92, %cst_29 [1] : vector<16x32xf32> to vector<16xf32>
    %96 = vector.shape_cast %95 : vector<16xf32> to vector<16x1xf32>
    %cst_30 = arith.constant 3.200000e+01 : f32
    %97 = vector.broadcast %cst_30 : f32 to vector<16x1xf32>
    %98 = arith.divf %96, %97 : vector<16x1xf32>
    %99 = vector.broadcast %98 : vector<16x1xf32> to vector<16x32xf32>
    %100 = arith.subf %92, %99 : vector<16x32xf32>
    %101 = arith.mulf %100, %100 : vector<16x32xf32>
    %cst_31 = arith.constant dense<0.000000e+00> : vector<16xf32>
    %102 = vector.multi_reduction <add>, %101, %cst_31 [1] : vector<16x32xf32> to vector<16xf32>
    %103 = vector.shape_cast %102 : vector<16xf32> to vector<16x1xf32>
    %cst_32 = arith.constant 3.200000e+01 : f32
    %104 = vector.broadcast %cst_32 : f32 to vector<16x1xf32>
    %105 = arith.divf %103, %104 : vector<16x1xf32>
    %cst_33 = arith.constant 9.99999996E-13 : f32
    %106 = vector.broadcast %cst_33 : f32 to vector<16x1xf32>
    %107 = arith.addf %105, %106 : vector<16x1xf32>
    %108 = math.rsqrt %107 : vector<16x1xf32>
    %109 = vector.broadcast %108 : vector<16x1xf32> to vector<16x32xf32>
    %110 = arith.mulf %100, %109 : vector<16x32xf32>
    %111 = vector.broadcast %93 : vector<1x32xf32> to vector<16x32xf32>
    %112 = arith.mulf %110, %111 : vector<16x32xf32>
    %113 = vector.broadcast %94 : vector<1x32xf32> to vector<16x32xf32>
    %114 = arith.addf %112, %113 : vector<16x32xf32>
    %115 = arith.truncf %114 : vector<16x32xf32> to vector<16x32xbf16>
    %c0_34 = arith.constant 0 : index
    %c0_35 = arith.constant 0 : index
    %116 = vector.load %arg11[%c0_34, %c0_35] : memref<32x128xbf16, #tpu.memory_space<vmem>>, vector<32x128xbf16>
    %cst_36 = arith.constant dense<0.000000e+00> : vector<16x128xf32>
    %117 = tpu.matmul %115, %116, %cst_36 {dimension_numbers = #tpu.dot_dimension_numbers<[1], [0], [0], [1], [0, 0, 1, 1], [], []>} : vector<16x32xbf16>, vector<32x128xbf16>, vector<16x128xf32> -> vector<16x128xf32>
    %c0_37 = arith.constant 0 : index
    %c0_38 = arith.constant 0 : index
    %118 = vector.load %arg12[%c0_37, %c0_38] : memref<1x128xf32, #tpu.memory_space<vmem>>, vector<1x128xf32>
    %119 = vector.broadcast %118 : vector<1x128xf32> to vector<16x128xf32>
    %120 = arith.addf %117, %119 : vector<16x128xf32>
    %cst_39 = arith.constant 0.000000e+00 : f32
    %121 = vector.broadcast %cst_39 : f32 to vector<16x128xf32>
    %122 = arith.maximumf %120, %121 : vector<16x128xf32>
    %123 = arith.truncf %122 : vector<16x128xf32> to vector<16x128xbf16>
    %c0_40 = arith.constant 0 : index
    %c0_41 = arith.constant 0 : index
    %124 = vector.load %arg13[%c0_40, %c0_41] : memref<128x32xbf16, #tpu.memory_space<vmem>>, vector<128x32xbf16>
    %cst_42 = arith.constant dense<0.000000e+00> : vector<16x32xf32>
    %125 = tpu.matmul %123, %124, %cst_42 {dimension_numbers = #tpu.dot_dimension_numbers<[1], [0], [0], [1], [0, 0, 1, 1], [], []>} : vector<16x128xbf16>, vector<128x32xbf16>, vector<16x32xf32> -> vector<16x32xf32>
    %c0_43 = arith.constant 0 : index
    %c0_44 = arith.constant 0 : index
    %126 = vector.load %arg14[%c0_43, %c0_44] : memref<1x32xf32, #tpu.memory_space<vmem>>, vector<1x32xf32>
    %127 = vector.broadcast %126 : vector<1x32xf32> to vector<16x32xf32>
    %128 = arith.addf %125, %127 : vector<16x32xf32>
    %129 = arith.addf %92, %128 : vector<16x32xf32>
    %c0_45 = arith.constant 0 : index
    %c0_46 = arith.constant 0 : index
    %130 = vector.load %arg15[%c0_45, %c0_46] : memref<1x32xf32, #tpu.memory_space<vmem>>, vector<1x32xf32>
    %c0_47 = arith.constant 0 : index
    %c0_48 = arith.constant 0 : index
    %131 = vector.load %arg16[%c0_47, %c0_48] : memref<1x32xf32, #tpu.memory_space<vmem>>, vector<1x32xf32>
    %cst_49 = arith.constant dense<0.000000e+00> : vector<16xf32>
    %132 = vector.multi_reduction <add>, %129, %cst_49 [1] : vector<16x32xf32> to vector<16xf32>
    %133 = vector.shape_cast %132 : vector<16xf32> to vector<16x1xf32>
    %cst_50 = arith.constant 3.200000e+01 : f32
    %134 = vector.broadcast %cst_50 : f32 to vector<16x1xf32>
    %135 = arith.divf %133, %134 : vector<16x1xf32>
    %136 = vector.broadcast %135 : vector<16x1xf32> to vector<16x32xf32>
    %137 = arith.subf %129, %136 : vector<16x32xf32>
    %138 = arith.mulf %137, %137 : vector<16x32xf32>
    %cst_51 = arith.constant dense<0.000000e+00> : vector<16xf32>
    %139 = vector.multi_reduction <add>, %138, %cst_51 [1] : vector<16x32xf32> to vector<16xf32>
    %140 = vector.shape_cast %139 : vector<16xf32> to vector<16x1xf32>
    %cst_52 = arith.constant 3.200000e+01 : f32
    %141 = vector.broadcast %cst_52 : f32 to vector<16x1xf32>
    %142 = arith.divf %140, %141 : vector<16x1xf32>
    %cst_53 = arith.constant 9.99999996E-13 : f32
    %143 = vector.broadcast %cst_53 : f32 to vector<16x1xf32>
    %144 = arith.addf %142, %143 : vector<16x1xf32>
    %145 = math.rsqrt %144 : vector<16x1xf32>
    %146 = vector.broadcast %145 : vector<16x1xf32> to vector<16x32xf32>
    %147 = arith.mulf %137, %146 : vector<16x32xf32>
    %148 = vector.broadcast %130 : vector<1x32xf32> to vector<16x32xf32>
    %149 = arith.mulf %147, %148 : vector<16x32xf32>
    %150 = vector.broadcast %131 : vector<1x32xf32> to vector<16x32xf32>
    %151 = arith.addf %149, %150 : vector<16x32xf32>
    %152 = vector.shape_cast %151 : vector<16x32xf32> to vector<2x256xf32>
    %c0_54 = arith.constant 0 : index
    %c0_55 = arith.constant 0 : index
    %153 = vector.load %arg17[%c0_54, %c0_55] : memref<2x256xf32, #tpu.memory_space<vmem>>, vector<2x256xf32>
    tpu.vector_store %arg17[%c0_54, %c0_55], %152 {strides = array<i32>} : memref<2x256xf32, #tpu.memory_space<vmem>>, vector<2x256xf32>,
    return
  }
  func.func @transform_0(%arg0: i32) -> (i32, i32) {
    %c0_i32 = arith.constant 0 : i32
    %c0_i32_0 = arith.constant 0 : i32
    return %arg0, %c0_i32 : i32, i32
  }
  func.func @transform_1(%arg0: i32) -> (i32, i32) {
    %c0_i32 = arith.constant 0 : i32
    %c0_i32_0 = arith.constant 0 : i32
    return %arg0, %c0_i32 : i32, i32
  }
  func.func @transform_2(%arg0: i32) -> (i32, i32) {
    %c0_i32 = arith.constant 0 : i32
    %c0_i32_0 = arith.constant 0 : i32
    %c0_i32_1 = arith.constant 0 : i32
    return %c0_i32, %c0_i32_0 : i32, i32
  }
  func.func @transform_3(%arg0: i32) -> (i32, i32) {
    %c0_i32 = arith.constant 0 : i32
    %c0_i32_0 = arith.constant 0 : i32
    %c0_i32_1 = arith.constant 0 : i32
    return %c0_i32, %c0_i32_0 : i32, i32
  }
  func.func @transform_4(%arg0: i32) -> (i32, i32) {
    %c0_i32 = arith.constant 0 : i32
    %c0_i32_0 = arith.constant 0 : i32
    %c0_i32_1 = arith.constant 0 : i32
    return %c0_i32, %c0_i32_0 : i32, i32
  }
  func.func @transform_5(%arg0: i32) -> (i32, i32) {
    %c0_i32 = arith.constant 0 : i32
    %c0_i32_0 = arith.constant 0 : i32
    %c0_i32_1 = arith.constant 0 : i32
    return %c0_i32, %c0_i32_0 : i32, i32
  }
  func.func @transform_6(%arg0: i32) -> (i32, i32) {
    %c0_i32 = arith.constant 0 : i32
    %c0_i32_0 = arith.constant 0 : i32
    %c0_i32_1 = arith.constant 0 : i32
    return %c0_i32, %c0_i32_0 : i32, i32
  }
  func.func @transform_7(%arg0: i32) -> (i32, i32) {
    %c0_i32 = arith.constant 0 : i32
    %c0_i32_0 = arith.constant 0 : i32
    %c0_i32_1 = arith.constant 0 : i32
    return %c0_i32, %c0_i32_0 : i32, i32
  }
  func.func @transform_8(%arg0: i32) -> (i32, i32) {
    %c0_i32 = arith.constant 0 : i32
    %c0_i32_0 = arith.constant 0 : i32
    %c0_i32_1 = arith.constant 0 : i32
    return %c0_i32, %c0_i32_0 : i32, i32
  }
  func.func @transform_9(%arg0: i32) -> (i32, i32) {
    %c0_i32 = arith.constant 0 : i32
    %c0_i32_0 = arith.constant 0 : i32
    %c0_i32_1 = arith.constant 0 : i32
    return %c0_i32, %c0_i32_0 : i32, i32
  }
  func.func @transform_10(%arg0: i32) -> (i32, i32) {
    %c0_i32 = arith.constant 0 : i32
    %c0_i32_0 = arith.constant 0 : i32
    %c0_i32_1 = arith.constant 0 : i32
    return %c0_i32, %c0_i32_0 : i32, i32
  }
  func.func @transform_11(%arg0: i32) -> (i32, i32) {
    %c0_i32 = arith.constant 0 : i32
    %c0_i32_0 = arith.constant 0 : i32
    %c0_i32_1 = arith.constant 0 : i32
    return %c0_i32, %c0_i32_0 : i32, i32
  }
  func.func @transform_12(%arg0: i32) -> (i32, i32) {
    %c0_i32 = arith.constant 0 : i32
    %c0_i32_0 = arith.constant 0 : i32
    %c0_i32_1 = arith.constant 0 : i32
    return %c0_i32, %c0_i32_0 : i32, i32
  }
  func.func @transform_13(%arg0: i32) -> (i32, i32) {
    %c0_i32 = arith.constant 0 : i32
    %c0_i32_0 = arith.constant 0 : i32
    %c0_i32_1 = arith.constant 0 : i32
    return %c0_i32, %c0_i32_0 : i32, i32
  }
  func.func @transform_14(%arg0: i32) -> (i32, i32) {
    %c0_i32 = arith.constant 0 : i32
    %c0_i32_0 = arith.constant 0 : i32
    %c0_i32_1 = arith.constant 0 : i32
    return %c0_i32, %c0_i32_0 : i32, i32
  }
  func.func @transform_15(%arg0: i32) -> (i32, i32) {
    %c0_i32 = arith.constant 0 : i32
    %c0_i32_0 = arith.constant 0 : i32
    %c0_i32_1 = arith.constant 0 : i32
    return %c0_i32, %c0_i32_0 : i32, i32
  }
  func.func @transform_16(%arg0: i32) -> (i32, i32) {
    %c0_i32 = arith.constant 0 : i32
    %c0_i32_0 = arith.constant 0 : i32
    return %arg0, %c0_i32 : i32, i32
  }
}

module attributes {stable_mosaic.version = 11 : i64} {
  func.func @_encoder_kernel(%arg0: i32, %arg1: memref<16x32xf32, #tpu.memory_space<vmem>>, %arg2: memref<2x8xf32, #tpu.memory_space<vmem>>, %arg3: memref<32x96xbf16, #tpu.memory_space<vmem>>, %arg4: memref<1x96xf32, #tpu.memory_space<vmem>>, %arg5: memref<32x32xbf16, #tpu.memory_space<vmem>>, %arg6: memref<1x32xf32, #tpu.memory_space<vmem>>, %arg7: memref<1x32xf32, #tpu.memory_space<vmem>>, %arg8: memref<1x32xf32, #tpu.memory_space<vmem>>, %arg9: memref<1x32xf32, #tpu.memory_space<vmem>>, %arg10: memref<1x32xf32, #tpu.memory_space<vmem>>, %arg11: memref<32x128xbf16, #tpu.memory_space<vmem>>, %arg12: memref<1x128xf32, #tpu.memory_space<vmem>>, %arg13: memref<128x32xbf16, #tpu.memory_space<vmem>>, %arg14: memref<1x32xf32, #tpu.memory_space<vmem>>, %arg15: memref<1x32xf32, #tpu.memory_space<vmem>>, %arg16: memref<1x32xf32, #tpu.memory_space<vmem>>, %arg17: memref<16x32xf32, #tpu.memory_space<vmem>>) attributes {dimension_semantics = [#tpu.dimension_semantics<parallel>], iteration_bounds = array<i64: 1>, scalar_prefetch = 0 : i64, scratch_operands = 0 : i64, tpu.core_type = #tpu.core_type<tc>, window_params = [{transform_indices = @transform_0, window_bounds = array<i64: 16, 32>}, {transform_indices = @transform_1, window_bounds = array<i64: 2, 8>}, {pipeline_mode = #tpu.pipeline_mode<synchronous>, transform_indices = @transform_2, window_bounds = array<i64: 32, 96>}, {pipeline_mode = #tpu.pipeline_mode<synchronous>, transform_indices = @transform_3, window_bounds = array<i64: 1, 96>}, {pipeline_mode = #tpu.pipeline_mode<synchronous>, transform_indices = @transform_4, window_bounds = array<i64: 32, 32>}, {pipeline_mode = #tpu.pipeline_mode<synchronous>, transform_indices = @transform_5, window_bounds = array<i64: 1, 32>}, {pipeline_mode = #tpu.pipeline_mode<synchronous>, transform_indices = @transform_6, window_bounds = array<i64: 1, 32>}, {pipeline_mode = #tpu.pipeline_mode<synchronous>, transform_indices = @transform_7, window_bounds = array<i64: 1, 32>}, {pipeline_mode = #tpu.pipeline_mode<synchronous>, transform_indices = @transform_8, window_bounds = array<i64: 1, 32>}, {pipeline_mode = #tpu.pipeline_mode<synchronous>, transform_indices = @transform_9, window_bounds = array<i64: 1, 32>}, {pipeline_mode = #tpu.pipeline_mode<synchronous>, transform_indices = @transform_10, window_bounds = array<i64: 32, 128>}, {pipeline_mode = #tpu.pipeline_mode<synchronous>, transform_indices = @transform_11, window_bounds = array<i64: 1, 128>}, {pipeline_mode = #tpu.pipeline_mode<synchronous>, transform_indices = @transform_12, window_bounds = array<i64: 128, 32>}, {pipeline_mode = #tpu.pipeline_mode<synchronous>, transform_indices = @transform_13, window_bounds = array<i64: 1, 32>}, {pipeline_mode = #tpu.pipeline_mode<synchronous>, transform_indices = @transform_14, window_bounds = array<i64: 1, 32>}, {pipeline_mode = #tpu.pipeline_mode<synchronous>, transform_indices = @transform_15, window_bounds = array<i64: 1, 32>}, {transform_indices = @transform_16, window_bounds = array<i64: 16, 32>}]} {
    %c0 = arith.constant 0 : index
    %c0_0 = arith.constant 0 : index
    %0 = vector.load %arg2[%c0, %c0_0] : memref<2x8xf32, #tpu.memory_space<vmem>>, vector<2x8xf32>
    %c0_1 = arith.constant 0 : index
    %c0_2 = arith.constant 0 : index
    %1 = vector.load %arg1[%c0_1, %c0_2] : memref<16x32xf32, #tpu.memory_space<vmem>>, vector<16x32xf32>
    %c0_3 = arith.constant 0 : index
    %c0_4 = arith.constant 0 : index
    %2 = vector.load %arg7[%c0_3, %c0_4] : memref<1x32xf32, #tpu.memory_space<vmem>>, vector<1x32xf32>
    %c0_5 = arith.constant 0 : index
    %c0_6 = arith.constant 0 : index
    %3 = vector.load %arg8[%c0_5, %c0_6] : memref<1x32xf32, #tpu.memory_space<vmem>>, vector<1x32xf32>
    %cst = arith.constant dense<0.000000e+00> : vector<16xf32>
    %4 = vector.multi_reduction <add>, %1, %cst [1] : vector<16x32xf32> to vector<16xf32>
    %5 = vector.shape_cast %4 : vector<16xf32> to vector<16x1xf32>
    %cst_7 = arith.constant 3.200000e+01 : f32
    %6 = vector.broadcast %cst_7 : f32 to vector<16x1xf32>
    %7 = arith.divf %5, %6 : vector<16x1xf32>
    %8 = vector.broadcast %7 : vector<16x1xf32> to vector<16x32xf32>
    %9 = arith.subf %1, %8 : vector<16x32xf32>
    %10 = arith.mulf %9, %9 : vector<16x32xf32>
    %cst_8 = arith.constant dense<0.000000e+00> : vector<16xf32>
    %11 = vector.multi_reduction <add>, %10, %cst_8 [1] : vector<16x32xf32> to vector<16xf32>
    %12 = vector.shape_cast %11 : vector<16xf32> to vector<16x1xf32>
    %cst_9 = arith.constant 3.200000e+01 : f32
    %13 = vector.broadcast %cst_9 : f32 to vector<16x1xf32>
    %14 = arith.divf %12, %13 : vector<16x1xf32>
    %cst_10 = arith.constant 9.99999996E-13 : f32
    %15 = vector.broadcast %cst_10 : f32 to vector<16x1xf32>
    %16 = arith.addf %14, %15 : vector<16x1xf32>
    %17 = math.rsqrt %16 : vector<16x1xf32>
    %18 = vector.broadcast %17 : vector<16x1xf32> to vector<16x32xf32>
    %19 = arith.mulf %9, %18 : vector<16x32xf32>
    %20 = vector.broadcast %2 : vector<1x32xf32> to vector<16x32xf32>
    %21 = arith.mulf %19, %20 : vector<16x32xf32>
    %22 = vector.broadcast %3 : vector<1x32xf32> to vector<16x32xf32>
    %23 = arith.addf %21, %22 : vector<16x32xf32>
    %24 = arith.truncf %23 : vector<16x32xf32> to vector<16x32xbf16>
    %c0_11 = arith.constant 0 : index
    %c0_12 = arith.constant 0 : index
    %25 = vector.load %arg3[%c0_11, %c0_12] : memref<32x96xbf16, #tpu.memory_space<vmem>>, vector<32x96xbf16>
    %cst_13 = arith.constant dense<0.000000e+00> : vector<16x96xf32>
    %26 = tpu.matmul %24, %25, %cst_13 {dimension_numbers = #tpu.dot_dimension_numbers<[1], [0], [0], [1], [0, 0, 1, 1], [], []>} : vector<16x32xbf16>, vector<32x96xbf16>, vector<16x96xf32> -> vector<16x96xf32>
    %c0_14 = arith.constant 0 : index
    %c0_15 = arith.constant 0 : index
    %27 = vector.load %arg4[%c0_14, %c0_15] : memref<1x96xf32, #tpu.memory_space<vmem>>, vector<1x96xf32>
    %28 = vector.broadcast %27 : vector<1x96xf32> to vector<16x96xf32>
    %29 = arith.addf %26, %28 : vector<16x96xf32>
    %30 = arith.truncf %29 : vector<16x96xf32> to vector<16x96xbf16>
    %31 = vector.extract_strided_slice %30 {offsets = [0, 0], sizes = [16, 8], strides = [1, 1]} : vector<16x96xbf16> to vector<16x8xbf16>
    %32 = vector.shape_cast %31 : vector<16x8xbf16> to vector<2x8x8xbf16>
    %33 = vector.extract_strided_slice %30 {offsets = [0, 8], sizes = [16, 8], strides = [1, 1]} : vector<16x96xbf16> to vector<16x8xbf16>
    %34 = vector.shape_cast %33 : vector<16x8xbf16> to vector<2x8x8xbf16>
    %35 = vector.extract_strided_slice %30 {offsets = [0, 16], sizes = [16, 8], strides = [1, 1]} : vector<16x96xbf16> to vector<16x8xbf16>
    %36 = vector.shape_cast %35 : vector<16x8xbf16> to vector<2x8x8xbf16>
    %37 = vector.extract_strided_slice %30 {offsets = [0, 24], sizes = [16, 8], strides = [1, 1]} : vector<16x96xbf16> to vector<16x8xbf16>
    %38 = vector.shape_cast %37 : vector<16x8xbf16> to vector<2x8x8xbf16>
    %39 = vector.extract_strided_slice %30 {offsets = [0, 32], sizes = [16, 8], strides = [1, 1]} : vector<16x96xbf16> to vector<16x8xbf16>
    %40 = vector.shape_cast %39 : vector<16x8xbf16> to vector<2x8x8xbf16>
    %41 = vector.extract_strided_slice %30 {offsets = [0, 40], sizes = [16, 8], strides = [1, 1]} : vector<16x96xbf16> to vector<16x8xbf16>
    %42 = vector.shape_cast %41 : vector<16x8xbf16> to vector<2x8x8xbf16>
    %43 = vector.extract_strided_slice %30 {offsets = [0, 48], sizes = [16, 8], strides = [1, 1]} : vector<16x96xbf16> to vector<16x8xbf16>
    %44 = vector.shape_cast %43 : vector<16x8xbf16> to vector<2x8x8xbf16>
    %45 = vector.extract_strided_slice %30 {offsets = [0, 56], sizes = [16, 8], strides = [1, 1]} : vector<16x96xbf16> to vector<16x8xbf16>
    %46 = vector.shape_cast %45 : vector<16x8xbf16> to vector<2x8x8xbf16>
    %47 = vector.extract_strided_slice %30 {offsets = [0, 64], sizes = [16, 8], strides = [1, 1]} : vector<16x96xbf16> to vector<16x8xbf16>
    %48 = vector.shape_cast %47 : vector<16x8xbf16> to vector<2x8x8xbf16>
    %49 = vector.extract_strided_slice %30 {offsets = [0, 72], sizes = [16, 8], strides = [1, 1]} : vector<16x96xbf16> to vector<16x8xbf16>
    %50 = vector.shape_cast %49 : vector<16x8xbf16> to vector<2x8x8xbf16>
    %51 = vector.extract_strided_slice %30 {offsets = [0, 80], sizes = [16, 8], strides = [1, 1]} : vector<16x96xbf16> to vector<16x8xbf16>
    %52 = vector.shape_cast %51 : vector<16x8xbf16> to vector<2x8x8xbf16>
    %53 = vector.extract_strided_slice %30 {offsets = [0, 88], sizes = [16, 8], strides = [1, 1]} : vector<16x96xbf16> to vector<16x8xbf16>
    %54 = vector.shape_cast %53 : vector<16x8xbf16> to vector<2x8x8xbf16>
    %55 = tpu.concatenate %32, %34, %36, %38, %40, %42, %44, %46, %48, %50, %52, %54 in 0 : vector<2x8x8xbf16>, vector<2x8x8xbf16>, vector<2x8x8xbf16>, vector<2x8x8xbf16>, vector<2x8x8xbf16>, vector<2x8x8xbf16>, vector<2x8x8xbf16>, vector<2x8x8xbf16>, vector<2x8x8xbf16>, vector<2x8x8xbf16>, vector<2x8x8xbf16>, vector<2x8x8xbf16> -> vector<24x8x8xbf16>
    %56 = vector.extract_strided_slice %55 {offsets = [0, 0, 0], sizes = [8, 8, 8], strides = [1, 1, 1]} : vector<24x8x8xbf16> to vector<8x8x8xbf16>
    %57 = vector.extract_strided_slice %55 {offsets = [8, 0, 0], sizes = [8, 8, 8], strides = [1, 1, 1]} : vector<24x8x8xbf16> to vector<8x8x8xbf16>
    %58 = vector.extract_strided_slice %55 {offsets = [16, 0, 0], sizes = [8, 8, 8], strides = [1, 1, 1]} : vector<24x8x8xbf16> to vector<8x8x8xbf16>
    "tpu.trace_start"() <{level = 10 : i32, message = "gqd,gkd->gqk"}> : () -> ()
    %cst_16 = arith.constant dense<0.000000e+00> : vector<8x8x8xf32>
    %59 = tpu.matmul %56, %57, %cst_16 {dimension_numbers = #tpu.dot_dimension_numbers<[2], [2], [1], [1], [0, 0, 0, 1, 1, 1], [0], [0]>} : vector<8x8x8xbf16>, vector<8x8x8xbf16>, vector<8x8x8xf32> -> vector<8x8x8xf32>
    "tpu.trace_stop"() : () -> ()
    %60 = vector.shape_cast %59 : vector<8x8x8xf32> to vector<4x2x8x8xf32>
    %61 = vector.shape_cast %0 : vector<2x8xf32> to vector<1x2x1x8xf32>
    %62 = vector.broadcast %61 : vector<1x2x1x8xf32> to vector<4x2x8x8xf32>
    %63 = arith.addf %60, %62 : vector<4x2x8x8xf32>
    %cst_17 = arith.constant dense<0xFF800000> : vector<4x2x8xf32>
    %64 = vector.multi_reduction <maximumf>, %63, %cst_17 [3] : vector<4x2x8x8xf32> to vector<4x2x8xf32>
    %65 = vector.shape_cast %64 : vector<4x2x8xf32> to vector<4x2x8x1xf32>
    %66 = vector.broadcast %65 : vector<4x2x8x1xf32> to vector<4x2x8x8xf32>
    %67 = arith.subf %63, %66 : vector<4x2x8x8xf32>
    %68 = math.exp %67 : vector<4x2x8x8xf32>
    %cst_18 = arith.constant dense<0.000000e+00> : vector<4x2x8xf32>
    %69 = vector.multi_reduction <add>, %68, %cst_18 [3] : vector<4x2x8x8xf32> to vector<4x2x8xf32>
    %70 = vector.shape_cast %69 : vector<4x2x8xf32> to vector<4x2x8x1xf32>
    %71 = tpu.reciprocal %70 {approx = true} : vector<4x2x8x1xf32> -> vector<4x2x8x1xf32>
    %72 = vector.broadcast %71 : vector<4x2x8x1xf32> to vector<4x2x8x8xf32>
    %73 = arith.mulf %68, %72 : vector<4x2x8x8xf32>
    %74 = arith.truncf %73 : vector<4x2x8x8xf32> to vector<4x2x8x8xbf16>
    %75 = vector.shape_cast %74 : vector<4x2x8x8xbf16> to vector<8x8x8xbf16>
    "tpu.trace_start"() <{level = 10 : i32, message = "gqk,gkd->gqd"}> : () -> ()
    %cst_19 = arith.constant dense<0.000000e+00> : vector<8x8x8xf32>
    %76 = tpu.matmul %75, %58, %cst_19 {dimension_numbers = #tpu.dot_dimension_numbers<[2], [1], [1], [2], [0, 0, 0, 1, 1, 2], [0], [0]>} : vector<8x8x8xbf16>, vector<8x8x8xbf16>, vector<8x8x8xf32> -> vector<8x8x8xf32>
    "tpu.trace_stop"() : () -> ()
    %77 = vector.extract_strided_slice %76 {offsets = [0, 0, 0], sizes = [2, 8, 8], strides = [1, 1, 1]} : vector<8x8x8xf32> to vector<2x8x8xf32>
    %78 = vector.shape_cast %77 : vector<2x8x8xf32> to vector<16x8xf32>
    %79 = vector.extract_strided_slice %76 {offsets = [2, 0, 0], sizes = [2, 8, 8], strides = [1, 1, 1]} : vector<8x8x8xf32> to vector<2x8x8xf32>
    %80 = vector.shape_cast %79 : vector<2x8x8xf32> to vector<16x8xf32>
    %81 = vector.extract_strided_slice %76 {offsets = [4, 0, 0], sizes = [2, 8, 8], strides = [1, 1, 1]} : vector<8x8x8xf32> to vector<2x8x8xf32>
    %82 = vector.shape_cast %81 : vector<2x8x8xf32> to vector<16x8xf32>
    %83 = vector.extract_strided_slice %76 {offsets = [6, 0, 0], sizes = [2, 8, 8], strides = [1, 1, 1]} : vector<8x8x8xf32> to vector<2x8x8xf32>
    %84 = vector.shape_cast %83 : vector<2x8x8xf32> to vector<16x8xf32>
    %85 = tpu.concatenate %78, %80, %82, %84 in 1 : vector<16x8xf32>, vector<16x8xf32>, vector<16x8xf32>, vector<16x8xf32> -> vector<16x32xf32>
    %86 = arith.truncf %85 : vector<16x32xf32> to vector<16x32xbf16>
    %c0_20 = arith.constant 0 : index
    %c0_21 = arith.constant 0 : index
    %87 = vector.load %arg5[%c0_20, %c0_21] : memref<32x32xbf16, #tpu.memory_space<vmem>>, vector<32x32xbf16>
    %cst_22 = arith.constant dense<0.000000e+00> : vector<16x32xf32>
    %88 = tpu.matmul %86, %87, %cst_22 {dimension_numbers = #tpu.dot_dimension_numbers<[1], [0], [0], [1], [0, 0, 1, 1], [], []>} : vector<16x32xbf16>, vector<32x32xbf16>, vector<16x32xf32> -> vector<16x32xf32>
    %c0_23 = arith.constant 0 : index
    %c0_24 = arith.constant 0 : index
    %89 = vector.load %arg6[%c0_23, %c0_24] : memref<1x32xf32, #tpu.memory_space<vmem>>, vector<1x32xf32>
    %90 = vector.broadcast %89 : vector<1x32xf32> to vector<16x32xf32>
    %91 = arith.addf %88, %90 : vector<16x32xf32>
    %92 = arith.addf %1, %91 : vector<16x32xf32>
    %c0_25 = arith.constant 0 : index
    %c0_26 = arith.constant 0 : index
    %93 = vector.load %arg9[%c0_25, %c0_26] : memref<1x32xf32, #tpu.memory_space<vmem>>, vector<1x32xf32>
    %c0_27 = arith.constant 0 : index
    %c0_28 = arith.constant 0 : index
    %94 = vector.load %arg10[%c0_27, %c0_28] : memref<1x32xf32, #tpu.memory_space<vmem>>, vector<1x32xf32>
    %cst_29 = arith.constant dense<0.000000e+00> : vector<16xf32>
    %95 = vector.multi_reduction <add>, %92, %cst_29 [1] : vector<16x32xf32> to vector<16xf32>
    %96 = vector.shape_cast %95 : vector<16xf32> to vector<16x1xf32>
    %cst_30 = arith.constant 3.200000e+01 : f32
    %97 = vector.broadcast %cst_30 : f32 to vector<16x1xf32>
    %98 = arith.divf %96, %97 : vector<16x1xf32>
    %99 = vector.broadcast %98 : vector<16x1xf32> to vector<16x32xf32>
    %100 = arith.subf %92, %99 : vector<16x32xf32>
    %101 = arith.mulf %100, %100 : vector<16x32xf32>
    %cst_31 = arith.constant dense<0.000000e+00> : vector<16xf32>
    %102 = vector.multi_reduction <add>, %101, %cst_31 [1] : vector<16x32xf32> to vector<16xf32>
    %103 = vector.shape_cast %102 : vector<16xf32> to vector<16x1xf32>
    %cst_32 = arith.constant 3.200000e+01 : f32
    %104 = vector.broadcast %cst_32 : f32 to vector<16x1xf32>
    %105 = arith.divf %103, %104 : vector<16x1xf32>
    %cst_33 = arith.constant 9.99999996E-13 : f32
    %106 = vector.broadcast %cst_33 : f32 to vector<16x1xf32>
    %107 = arith.addf %105, %106 : vector<16x1xf32>
    %108 = math.rsqrt %107 : vector<16x1xf32>
    %109 = vector.broadcast %108 : vector<16x1xf32> to vector<16x32xf32>
    %110 = arith.mulf %100, %109 : vector<16x32xf32>
    %111 = vector.broadcast %93 : vector<1x32xf32> to vector<16x32xf32>
    %112 = arith.mulf %110, %111 : vector<16x32xf32>
    %113 = vector.broadcast %94 : vector<1x32xf32> to vector<16x32xf32>
    %114 = arith.addf %112, %113 : vector<16x32xf32>
    %115 = arith.truncf %114 : vector<16x32xf32> to vector<16x32xbf16>
    %c0_34 = arith.constant 0 : index
    %c0_35 = arith.constant 0 : index
    %116 = vector.load %arg11[%c0_34, %c0_35] : memref<32x128xbf16, #tpu.memory_space<vmem>>, vector<32x128xbf16>
    %cst_36 = arith.constant dense<0.000000e+00> : vector<16x128xf32>
    %117 = tpu.matmul %115, %116, %cst_36 {dimension_numbers = #tpu.dot_dimension_numbers<[1], [0], [0], [1], [0, 0, 1, 1], [], []>} : vector<16x32xbf16>, vector<32x128xbf16>, vector<16x128xf32> -> vector<16x128xf32>
    %c0_37 = arith.constant 0 : index
    %c0_38 = arith.constant 0 : index
    %118 = vector.load %arg12[%c0_37, %c0_38] : memref<1x128xf32, #tpu.memory_space<vmem>>, vector<1x128xf32>
    %119 = vector.broadcast %118 : vector<1x128xf32> to vector<16x128xf32>
    %120 = arith.addf %117, %119 : vector<16x128xf32>
    %cst_39 = arith.constant 0.000000e+00 : f32
    %121 = vector.broadcast %cst_39 : f32 to vector<16x128xf32>
    %122 = arith.maximumf %120, %121 : vector<16x128xf32>
    %123 = arith.truncf %122 : vector<16x128xf32> to vector<16x128xbf16>
    %c0_40 = arith.constant 0 : index
    %c0_41 = arith.constant 0 : index
    %124 = vector.load %arg13[%c0_40, %c0_41] : memref<128x32xbf16, #tpu.memory_space<vmem>>, vector<128x32xbf16>
    %cst_42 = arith.constant dense<0.000000e+00> : vector<16x32xf32>
    %125 = tpu.matmul %123, %124, %cst_42 {dimension_numbers = #tpu.dot_dimension_numbers<[1], [0], [0], [1], [0, 0, 1, 1], [], []>} : vector<16x128xbf16>, vector<128x32xbf16>, vector<16x32xf32> -> vector<16x32xf32>
    %c0_43 = arith.constant 0 : index
    %c0_44 = arith.constant 0 : index
    %126 = vector.load %arg14[%c0_43, %c0_44] : memref<1x32xf32, #tpu.memory_space<vmem>>, vector<1x32xf32>
    %127 = vector.broadcast %126 : vector<1x32xf32> to vector<16x32xf32>
    %128 = arith.addf %125, %127 : vector<16x32xf32>
    %129 = arith.addf %92, %128 : vector<16x32xf32>
    %c0_45 = arith.constant 0 : index
    %c0_46 = arith.constant 0 : index
    %130 = vector.load %arg15[%c0_45, %c0_46] : memref<1x32xf32, #tpu.memory_space<vmem>>, vector<1x32xf32>
    %c0_47 = arith.constant 0 : index
    %c0_48 = arith.constant 0 : index
    %131 = vector.load %arg16[%c0_47, %c0_48] : memref<1x32xf32, #tpu.memory_space<vmem>>, vector<1x32xf32>
    %cst_49 = arith.constant dense<0.000000e+00> : vector<16xf32>
    %132 = vector.multi_reduction <add>, %129, %cst_49 [1] : vector<16x32xf32> to vector<16xf32>
    %133 = vector.shape_cast %132 : vector<16xf32> to vector<16x1xf32>
    %cst_50 = arith.constant 3.200000e+01 : f32
    %134 = vector.broadcast %cst_50 : f32 to vector<16x1xf32>
    %135 = arith.divf %133, %134 : vector<16x1xf32>
    %136 = vector.broadcast %135 : vector<16x1xf32> to vector<16x32xf32>
    %137 = arith.subf %129, %136 : vector<16x32xf32>
    %138 = arith.mulf %137, %137 : vector<16x32xf32>
    %cst_51 = arith.constant dense<0.000000e+00> : vector<16xf32>
    %139 = vector.multi_reduction <add>, %138, %cst_51 [1] : vector<16x32xf32> to vector<16xf32>
    %140 = vector.shape_cast %139 : vector<16xf32> to vector<16x1xf32>
    %cst_52 = arith.constant 3.200000e+01 : f32
    %141 = vector.broadcast %cst_52 : f32 to vector<16x1xf32>
    %142 = arith.divf %140, %141 : vector<16x1xf32>
    %cst_53 = arith.constant 9.99999996E-13 : f32
    %143 = vector.broadcast %cst_53 : f32 to vector<16x1xf32>
    %144 = arith.addf %142, %143 : vector<16x1xf32>
    %145 = math.rsqrt %144 : vector<16x1xf32>
    %146 = vector.broadcast %145 : vector<16x1xf32> to vector<16x32xf32>
    %147 = arith.mulf %137, %146 : vector<16x32xf32>
    %148 = vector.broadcast %130 : vector<1x32xf32> to vector<16x32xf32>
    %149 = arith.mulf %147, %148 : vector<16x32xf32>
    %150 = vector.broadcast %131 : vector<1x32xf32> to vector<16x32xf32>
    %151 = arith.addf %149, %150 : vector<16x32xf32>
    %c0_54 = arith.constant 0 : index
    %c0_55 = arith.constant 0 : index
    %152 = vector.load %arg17[%c0_54, %c0_55] : memref<16x32xf32, #tpu.memory_space<vmem>>, vector<16x32xf32>
    tpu.vector_store %arg17[%c0_54, %c0_55], %151 {strides = array<i32>} : memref<16x32xf32, #tpu.memory_space<vmem>>, vector<16x32xf32>,
    return
  }
  func.func @transform_0(%arg0: i32) -> (i32, i32) {
    %c0_i32 = arith.constant 0 : i32
    %c0_i32_0 = arith.constant 0 : i32
    return %arg0, %c0_i32 : i32, i32
  }
  func.func @transform_1(%arg0: i32) -> (i32, i32) {
    %c0_i32 = arith.constant 0 : i32
    %c0_i32_0 = arith.constant 0 : i32
    return %arg0, %c0_i32 : i32, i32
  }
  func.func @transform_2(%arg0: i32) -> (i32, i32) {
    %c0_i32 = arith.constant 0 : i32
    %c0_i32_0 = arith.constant 0 : i32
    %c0_i32_1 = arith.constant 0 : i32
    return %c0_i32, %c0_i32_0 : i32, i32
  }
  func.func @transform_3(%arg0: i32) -> (i32, i32) {
    %c0_i32 = arith.constant 0 : i32
    %c0_i32_0 = arith.constant 0 : i32
    %c0_i32_1 = arith.constant 0 : i32
    return %c0_i32, %c0_i32_0 : i32, i32
  }
  func.func @transform_4(%arg0: i32) -> (i32, i32) {
    %c0_i32 = arith.constant 0 : i32
    %c0_i32_0 = arith.constant 0 : i32
    %c0_i32_1 = arith.constant 0 : i32
    return %c0_i32, %c0_i32_0 : i32, i32
  }
  func.func @transform_5(%arg0: i32) -> (i32, i32) {
    %c0_i32 = arith.constant 0 : i32
    %c0_i32_0 = arith.constant 0 : i32
    %c0_i32_1 = arith.constant 0 : i32
    return %c0_i32, %c0_i32_0 : i32, i32
  }
  func.func @transform_6(%arg0: i32) -> (i32, i32) {
    %c0_i32 = arith.constant 0 : i32
    %c0_i32_0 = arith.constant 0 : i32
    %c0_i32_1 = arith.constant 0 : i32
    return %c0_i32, %c0_i32_0 : i32, i32
  }
  func.func @transform_7(%arg0: i32) -> (i32, i32) {
    %c0_i32 = arith.constant 0 : i32
    %c0_i32_0 = arith.constant 0 : i32
    %c0_i32_1 = arith.constant 0 : i32
    return %c0_i32, %c0_i32_0 : i32, i32
  }
  func.func @transform_8(%arg0: i32) -> (i32, i32) {
    %c0_i32 = arith.constant 0 : i32
    %c0_i32_0 = arith.constant 0 : i32
    %c0_i32_1 = arith.constant 0 : i32
    return %c0_i32, %c0_i32_0 : i32, i32
  }
  func.func @transform_9(%arg0: i32) -> (i32, i32) {
    %c0_i32 = arith.constant 0 : i32
    %c0_i32_0 = arith.constant 0 : i32
    %c0_i32_1 = arith.constant 0 : i32
    return %c0_i32, %c0_i32_0 : i32, i32
  }
  func.func @transform_10(%arg0: i32) -> (i32, i32) {
    %c0_i32 = arith.constant 0 : i32
    %c0_i32_0 = arith.constant 0 : i32
    %c0_i32_1 = arith.constant 0 : i32
    return %c0_i32, %c0_i32_0 : i32, i32
  }
  func.func @transform_11(%arg0: i32) -> (i32, i32) {
    %c0_i32 = arith.constant 0 : i32
    %c0_i32_0 = arith.constant 0 : i32
    %c0_i32_1 = arith.constant 0 : i32
    return %c0_i32, %c0_i32_0 : i32, i32
  }
  func.func @transform_12(%arg0: i32) -> (i32, i32) {
    %c0_i32 = arith.constant 0 : i32
    %c0_i32_0 = arith.constant 0 : i32
    %c0_i32_1 = arith.constant 0 : i32
    return %c0_i32, %c0_i32_0 : i32, i32
  }
  func.func @transform_13(%arg0: i32) -> (i32, i32) {
    %c0_i32 = arith.constant 0 : i32
    %c0_i32_0 = arith.constant 0 : i32
    %c0_i32_1 = arith.constant 0 : i32
    return %c0_i32, %c0_i32_0 : i32, i32
  }
  func.func @transform_14(%arg0: i32) -> (i32, i32) {
    %c0_i32 = arith.constant 0 : i32
    %c0_i32_0 = arith.constant 0 : i32
    %c0_i32_1 = arith.constant 0 : i32
    return %c0_i32, %c0_i32_0 : i32, i32
  }
  func.func @transform_15(%arg0: i32) -> (i32, i32) {
    %c0_i32 = arith.constant 0 : i32
    %c0_i32_0 = arith.constant 0 : i32
    %c0_i32_1 = arith.constant 0 : i32
    return %c0_i32, %c0_i32_0 : i32, i32
  }
  func.func @transform_16(%arg0: i32) -> (i32, i32) {
    %c0_i32 = arith.constant 0 : i32
    %c0_i32_0 = arith.constant 0 : i32
    return %arg0, %c0_i32 : i32, i32
  }
}

</mosaic_0001>

<llo_original>
// kernel: tpu_custom_call.1
$region0: #{tpu_custom_call.1}
  #allocation0 [shape = 'u32[]', space=smem, size = 0x4, offset = 0x4, fixed_abs, tag = 'smem constant byte address 0x4 - core index']
  #allocation1 [shape = 'u32[144,128]{1,0:T(1,128)}', space=vmem, size = 0x12000, scoped, tag = 'internal scratch']
  %s0 = inlined_call_operand.hbm [shape: f32[16,32], index: 0, kind: input, shape index: {}]
  %s1 = inlined_call_operand.hbm [shape: f32[2,8], index: 1, kind: input, shape index: {}]
  %s2 = inlined_call_operand.hbm [shape: bf16[32,96], index: 2, kind: input, shape index: {}]
  %s3 = inlined_call_operand.hbm [shape: f32[1,96], index: 3, kind: input, shape index: {}]
  %s4 = inlined_call_operand.hbm [shape: bf16[32,32], index: 4, kind: input, shape index: {}]
  %s5 = inlined_call_operand.hbm [shape: f32[1,32], index: 5, kind: input, shape index: {}]
  %s6 = inlined_call_operand.hbm [shape: f32[1,32], index: 6, kind: input, shape index: {}]
  %s7 = inlined_call_operand.hbm [shape: f32[1,32], index: 7, kind: input, shape index: {}]
  %s8 = inlined_call_operand.hbm [shape: f32[1,32], index: 8, kind: input, shape index: {}]
  %s9 = inlined_call_operand.hbm [shape: f32[1,32], index: 9, kind: input, shape index: {}]
  %s10 = inlined_call_operand.hbm [shape: bf16[32,128], index: 10, kind: input, shape index: {}]
  %s11 = inlined_call_operand.hbm [shape: f32[1,128], index: 11, kind: input, shape index: {}]
  %s12 = inlined_call_operand.hbm [shape: bf16[128,32], index: 12, kind: input, shape index: {}]
  %s13 = inlined_call_operand.hbm [shape: f32[1,32], index: 13, kind: input, shape index: {}]
  %s14 = inlined_call_operand.hbm [shape: f32[1,32], index: 14, kind: input, shape index: {}]
  %s15 = inlined_call_operand.hbm [shape: f32[1,32], index: 15, kind: input, shape index: {}]
  %s16 = inlined_call_operand.hbm [shape: f32[16,32], index: 16, kind: output, shape index: {}]
  %s17 = sld [smem:[#allocation0]]
  $region138: #{tpu_custom_call.1} parent=0
    _
  %s19 = ssub.s32 1, %s17
  %s20 = scalar_select 0, %s19, %s17
  $region1: #{tpu_custom_call.1} parent=0
    #allocation2 [shape = 'u8[8192]{0}', space=vmem, size = 0x2000, scoped, tag = 'input window, operand 0, single buffered']
    #allocation3 [shape = 's32[1]{0}', space=sflag, size = 0x4, scoped, tag = 'scoped memory for tpu_custom_call.1']
    #allocation4 [shape = 's32[1]{0}', space=sflag, size = 0x4, scoped, tag = 'scoped memory for tpu_custom_call.1']
    #allocation5 [shape = 'u8[1024]{0}', space=vmem, size = 0x400, scoped, tag = 'input window, operand 1, single buffered']
    #allocation6 [shape = 's32[1]{0}', space=sflag, size = 0x4, scoped, tag = 'scoped memory for tpu_custom_call.1']
    #allocation7 [shape = 'u8[8192]{0}', space=vmem, size = 0x2000, scoped, tag = 'input window, operand 2, single buffered']
    #allocation8 [shape = 'u8[512]{0}', space=vmem, size = 0x400, scoped, tag = 'input window, operand 3, single buffered']
    #allocation9 [shape = 's32[1]{0}', space=sflag, size = 0x4, scoped, tag = 'scoped memory for tpu_custom_call.1']
    #allocation10 [shape = 'u8[8192]{0}', space=vmem, size = 0x2000, scoped, tag = 'input window, operand 4, single buffered']
    #allocation11 [shape = 'u8[512]{0}', space=vmem, size = 0x400, scoped, tag = 'input window, operand 5, single buffered']
    #allocation12 [shape = 's32[1]{0}', space=sflag, size = 0x4, scoped, tag = 'scoped memory for tpu_custom_call.1']
    #allocation13 [shape = 'u8[512]{0}', space=vmem, size = 0x400, scoped, tag = 'input window, operand 6, single buffered']
    #allocation14 [shape = 'u8[512]{0}', space=vmem, size = 0x400, scoped, tag = 'input window, operand 7, single buffered']
    #allocation15 [shape = 's32[1]{0}', space=sflag, size = 0x4, scoped, tag = 'scoped memory for tpu_custom_call.1']
    #allocation16 [shape = 'u8[512]{0}', space=vmem, size = 0x400, scoped, tag = 'input window, operand 8, single buffered']
    #allocation17 [shape = 'u8[512]{0}', space=vmem, size = 0x400, scoped, tag = 'input window, operand 9, single buffered']
    #allocation18 [shape = 's32[1]{0}', space=sflag, size = 0x4, scoped, tag = 'scoped memory for tpu_custom_call.1']
    #allocation19 [shape = 'u8[8192]{0}', space=vmem, size = 0x2000, scoped, tag = 'input window, operand 10, single buffered']
    #allocation20 [shape = 'u8[512]{0}', space=vmem, size = 0x400, scoped, tag = 'input window, operand 11, single buffered']
    #allocation21 [shape = 's32[1]{0}', space=sflag, size = 0x4, scoped, tag = 'scoped memory for tpu_custom_call.1']
    #allocation22 [shape = 'u8[32768]{0}', space=vmem, size = 0x8000, scoped, tag = 'input window, operand 12, single buffered']
    #allocation23 [shape = 'u8[512]{0}', space=vmem, size = 0x400, scoped, tag = 'input window, operand 13, single buffered']
    #allocation24 [shape = 's32[1]{0}', space=sflag, size = 0x4, scoped, tag = 'scoped memory for tpu_custom_call.1']
    #allocation25 [shape = 'u8[512]{0}', space=vmem, size = 0x400, scoped, tag = 'input window, operand 14, single buffered']
    #allocation26 [shape = 'u8[512]{0}', space=vmem, size = 0x400, scoped, tag = 'input window, operand 15, single buffered']
    #allocation27 [shape = 's32[1]{0}', space=sflag, size = 0x4, scoped, tag = 'scoped memory for tpu_custom_call.1']
    #allocation28 [shape = 'u8[8192]{0}', space=vmem, size = 0x2000, scoped, tag = 'output window, operand 0, single buffered']
    %21 = vsyncpa [#allocation3], 0
    %22 = vsyncpa [#allocation6], 0
    %23 = vsyncpa [#allocation9], 0
    %24 = vsyncpa [#allocation12], 0
    %25 = vsyncpa [#allocation15], 0
    %26 = vsyncpa [#allocation18], 0
    %27 = vsyncpa [#allocation21], 0
    %28 = vsyncpa [#allocation24], 0
    %29 = vsyncpa [#allocation27], 0
    %30 = vsyncpa [#allocation4], 0
    // Predicated region
    $region2: #{tpu_custom_call.1} parent=1 // pred_check
      _
    $region3: #{tpu_custom_call.1} parent=1 // pred_check_branch
      %32 = sbr.rel (0) target = $region5
    $region4: #{tpu_custom_call.1} parent=1 // pred_region
      %s34 = ssub.s32 256, 256
      %35 = vsyncadd [#allocation3], %s34
      %s36 = sshll.u32 [#allocation2], 4
      %s37 = int_to_ptr.vmem [resolvable:$true] %s36
      %42 = dma.hbm_to_vmem [thread:$0]  %s0, 256, %s37, [#allocation3], 128, 128, 8
    $region5: #{tpu_custom_call.1} parent=1 // pred_fallthru
      _
    // Predicated region
    $region6: #{tpu_custom_call.1} parent=1 // pred_check
      _
    $region7: #{tpu_custom_call.1} parent=1 // pred_check_branch
      %44 = sbr.rel (0) target = $region9
    $region8: #{tpu_custom_call.1} parent=1 // pred_region
      %s46 = ssub.s32 32, 32
      %47 = vsyncadd [#allocation6], %s46
      %s49 = sshll.u32 [#allocation5], 4
      %s50 = int_to_ptr.vmem [resolvable:$true] %s49
      %52 = dma.hbm_to_vmem [thread:$0]  %s1, 32, %s50, [#allocation6]
    $region9: #{tpu_custom_call.1} parent=1 // pred_fallthru
      _
    // Predicated region
    $region10: #{tpu_custom_call.1} parent=1 // pred_check
      _
    $region11: #{tpu_custom_call.1} parent=1 // pred_check_branch
      %54 = sbr.rel (0) target = $region13
    $region12: #{tpu_custom_call.1} parent=1 // pred_region
      %s56 = ssub.s32 256, 256
      %57 = vsyncadd [#allocation6], %s56
      %s58 = sshll.u32 [#allocation7], 4
      %s59 = int_to_ptr.vmem [resolvable:$true] %s58
      %64 = dma.hbm_to_vmem [thread:$0]  %s2, 256, %s59, [#allocation6], 64, 64, 4
    $region13: #{tpu_custom_call.1} parent=1 // pred_fallthru
      _
    // Predicated region
    $region14: #{tpu_custom_call.1} parent=1 // pred_check
      _
    $region15: #{tpu_custom_call.1} parent=1 // pred_check_branch
      %66 = sbr.rel (0) target = $region17
    $region16: #{tpu_custom_call.1} parent=1 // pred_region
      %s68 = ssub.s32 16, 16
      %69 = vsyncadd [#allocation9], %s68
      %s71 = sshll.u32 [#allocation8], 4
      %s72 = int_to_ptr.vmem [resolvable:$true] %s71
      %74 = dma.hbm_to_vmem [thread:$0]  %s3, 16, %s72, [#allocation9]
    $region17: #{tpu_custom_call.1} parent=1 // pred_fallthru
      _
    // Predicated region
    $region18: #{tpu_custom_call.1} parent=1 // pred_check
      _
    $region19: #{tpu_custom_call.1} parent=1 // pred_check_branch
      %76 = sbr.rel (0) target = $region21
    $region20: #{tpu_custom_call.1} parent=1 // pred_region
      %s78 = ssub.s32 256, 256
      %79 = vsyncadd [#allocation9], %s78
      %s80 = sshll.u32 [#allocation10], 4
      %s81 = int_to_ptr.vmem [resolvable:$true] %s80
      %86 = dma.hbm_to_vmem [thread:$0]  %s4, 256, %s81, [#allocation9], 64, 64, 4
    $region21: #{tpu_custom_call.1} parent=1 // pred_fallthru
      _
    // Predicated region
    $region22: #{tpu_custom_call.1} parent=1 // pred_check
      _
    $region23: #{tpu_custom_call.1} parent=1 // pred_check_branch
      %88 = sbr.rel (0) target = $region25
    $region24: #{tpu_custom_call.1} parent=1 // pred_region
      %s90 = ssub.s32 16, 16
      %91 = vsyncadd [#allocation12], %s90
      %s93 = sshll.u32 [#allocation11], 4
      %s94 = int_to_ptr.vmem [resolvable:$true] %s93
      %96 = dma.hbm_to_vmem [thread:$0]  %s5, 16, %s94, [#allocation12]
    $region25: #{tpu_custom_call.1} parent=1 // pred_fallthru
      _
    // Predicated region
    $region26: #{tpu_custom_call.1} parent=1 // pred_check
      _
    $region27: #{tpu_custom_call.1} parent=1 // pred_check_branch
      %98 = sbr.rel (0) target = $region29
    $region28: #{tpu_custom_call.1} parent=1 // pred_region
      %s100 = ssub.s32 16, 16
      %101 = vsyncadd [#allocation12], %s100
      %s103 = sshll.u32 [#allocation13], 4
      %s104 = int_to_ptr.vmem [resolvable:$true] %s103
      %106 = dma.hbm_to_vmem [thread:$0]  %s6, 16, %s104, [#allocation12]
    $region29: #{tpu_custom_call.1} parent=1 // pred_fallthru
      _
    // Predicated region
    $region30: #{tpu_custom_call.1} parent=1 // pred_check
      _
    $region31: #{tpu_custom_call.1} parent=1 // pred_check_branch
      %108 = sbr.rel (0) target = $region33
    $region32: #{tpu_custom_call.1} parent=1 // pred_region
      %s110 = ssub.s32 16, 16
      %111 = vsyncadd [#allocation15], %s110
      %s113 = sshll.u32 [#allocation14], 4
      %s114 = int_to_ptr.vmem [resolvable:$true] %s113
      %116 = dma.hbm_to_vmem [thread:$0]  %s7, 16, %s114, [#allocation15]
    $region33: #{tpu_custom_call.1} parent=1 // pred_fallthru
      _
    // Predicated region
    $region34: #{tpu_custom_call.1} parent=1 // pred_check
      _
    $region35: #{tpu_custom_call.1} parent=1 // pred_check_branch
      %118 = sbr.rel (0) target = $region37
    $region36: #{tpu_custom_call.1} parent=1 // pred_region
      %s120 = ssub.s32 16, 16
      %121 = vsyncadd [#allocation15], %s120
      %s123 = sshll.u32 [#allocation16], 4
      %s124 = int_to_ptr.vmem [resolvable:$true] %s123
      %126 = dma.hbm_to_vmem [thread:$0]  %s8, 16, %s124, [#allocation15]
    $region37: #{tpu_custom_call.1} parent=1 // pred_fallthru
      _
    // Predicated region
    $region38: #{tpu_custom_call.1} parent=1 // pred_check
      _
    $region39: #{tpu_custom_call.1} parent=1 // pred_check_branch
      %128 = sbr.rel (0) target = $region41
    $region40: #{tpu_custom_call.1} parent=1 // pred_region
      %s130 = ssub.s32 16, 16
      %131 = vsyncadd [#allocation18], %s130
      %s133 = sshll.u32 [#allocation17], 4
      %s134 = int_to_ptr.vmem [resolvable:$true] %s133
      %136 = dma.hbm_to_vmem [thread:$0]  %s9, 16, %s134, [#allocation18]
    $region41: #{tpu_custom_call.1} parent=1 // pred_fallthru
      _
    // Predicated region
    $region42: #{tpu_custom_call.1} parent=1 // pred_check
      _
    $region43: #{tpu_custom_call.1} parent=1 // pred_check_branch
      %138 = sbr.rel (0) target = $region45
    $region44: #{tpu_custom_call.1} parent=1 // pred_region
      %s140 = ssub.s32 256, 256
      %141 = vsyncadd [#allocation18], %s140
      %s142 = sshll.u32 [#allocation19], 4
      %s143 = int_to_ptr.vmem [resolvable:$true] %s142
      %148 = dma.hbm_to_vmem [thread:$0]  %s10, 256, %s143, [#allocation18], 64, 64, 4
    $region45: #{tpu_custom_call.1} parent=1 // pred_fallthru
      _
    // Predicated region
    $region46: #{tpu_custom_call.1} parent=1 // pred_check
      _
    $region47: #{tpu_custom_call.1} parent=1 // pred_check_branch
      %150 = sbr.rel (0) target = $region49
    $region48: #{tpu_custom_call.1} parent=1 // pred_region
      %s152 = ssub.s32 16, 16
      %153 = vsyncadd [#allocation21], %s152
      %s155 = sshll.u32 [#allocation20], 4
      %s156 = int_to_ptr.vmem [resolvable:$true] %s155
      %158 = dma.hbm_to_vmem [thread:$0]  %s11, 16, %s156, [#allocation21]
    $region49: #{tpu_custom_call.1} parent=1 // pred_fallthru
      _
    // Predicated region
    $region50: #{tpu_custom_call.1} parent=1 // pred_check
      _
    $region51: #{tpu_custom_call.1} parent=1 // pred_check_branch
      %160 = sbr.rel (0) target = $region53
    $region52: #{tpu_custom_call.1} parent=1 // pred_region
      %s162 = ssub.s32 1024, 1024
      %163 = vsyncadd [#allocation21], %s162
      %s164 = sshll.u32 [#allocation22], 4
      %s165 = int_to_ptr.vmem [resolvable:$true] %s164
      %170 = dma.hbm_to_vmem [thread:$0]  %s12, 1024, %s165, [#allocation21], 64, 64, 4
    $region53: #{tpu_custom_call.1} parent=1 // pred_fallthru
      _
    // Predicated region
    $region54: #{tpu_custom_call.1} parent=1 // pred_check
      _
    $region55: #{tpu_custom_call.1} parent=1 // pred_check_branch
      %172 = sbr.rel (0) target = $region57
    $region56: #{tpu_custom_call.1} parent=1 // pred_region
      %s174 = ssub.s32 16, 16
      %175 = vsyncadd [#allocation24], %s174
      %s177 = sshll.u32 [#allocation23], 4
      %s178 = int_to_ptr.vmem [resolvable:$true] %s177
      %180 = dma.hbm_to_vmem [thread:$0]  %s13, 16, %s178, [#allocation24]
    $region57: #{tpu_custom_call.1} parent=1 // pred_fallthru
      _
    // Predicated region
    $region58: #{tpu_custom_call.1} parent=1 // pred_check
      _
    $region59: #{tpu_custom_call.1} parent=1 // pred_check_branch
      %182 = sbr.rel (0) target = $region61
    $region60: #{tpu_custom_call.1} parent=1 // pred_region
      %s184 = ssub.s32 16, 16
      %185 = vsyncadd [#allocation24], %s184
      %s187 = sshll.u32 [#allocation25], 4
      %s188 = int_to_ptr.vmem [resolvable:$true] %s187
      %190 = dma.hbm_to_vmem [thread:$0]  %s14, 16, %s188, [#allocation24]
    $region61: #{tpu_custom_call.1} parent=1 // pred_fallthru
      _
    // Predicated region
    $region62: #{tpu_custom_call.1} parent=1 // pred_check
      _
    $region63: #{tpu_custom_call.1} parent=1 // pred_check_branch
      %192 = sbr.rel (0) target = $region65
    $region64: #{tpu_custom_call.1} parent=1 // pred_region
      %s194 = ssub.s32 16, 16
      %195 = vsyncadd [#allocation27], %s194
      %s197 = sshll.u32 [#allocation26], 4
      %s198 = int_to_ptr.vmem [resolvable:$true] %s197
      %200 = dma.hbm_to_vmem [thread:$0]  %s15, 16, %s198, [#allocation27]
    $region65: #{tpu_custom_call.1} parent=1 // pred_fallthru
      _
    // Predicated region
    $region66: #{tpu_custom_call.1} parent=1 // pred_check
      _
    $region67: #{tpu_custom_call.1} parent=1 // pred_check_branch
      %202 = sbr.rel (0) target = $region69
    $region68: #{tpu_custom_call.1} parent=1 // pred_region
      %203 = dma.done [#allocation3], 256
    $region69: #{tpu_custom_call.1} parent=1 // pred_fallthru
      _
    // Predicated region
    $region70: #{tpu_custom_call.1} parent=1 // pred_check
      _
    $region71: #{tpu_custom_call.1} parent=1 // pred_check_branch
      %205 = sbr.rel (0) target = $region73
    $region72: #{tpu_custom_call.1} parent=1 // pred_region
      %206 = dma.done [#allocation6], 32
    $region73: #{tpu_custom_call.1} parent=1 // pred_fallthru
      _
    // Predicated region
    $region74: #{tpu_custom_call.1} parent=1 // pred_check
      _
    $region75: #{tpu_custom_call.1} parent=1 // pred_check_branch
      %208 = sbr.rel (0) target = $region77
    $region76: #{tpu_custom_call.1} parent=1 // pred_region
      %209 = dma.done [#allocation6], 256
    $region77: #{tpu_custom_call.1} parent=1 // pred_fallthru
      _
    // Predicated region
    $region78: #{tpu_custom_call.1} parent=1 // pred_check
      _
    $region79: #{tpu_custom_call.1} parent=1 // pred_check_branch
      %211 = sbr.rel (0) target = $region81
    $region80: #{tpu_custom_call.1} parent=1 // pred_region
      %212 = dma.done [#allocation9], 16
    $region81: #{tpu_custom_call.1} parent=1 // pred_fallthru
      _
    // Predicated region
    $region82: #{tpu_custom_call.1} parent=1 // pred_check
      _
    $region83: #{tpu_custom_call.1} parent=1 // pred_check_branch
      %214 = sbr.rel (0) target = $region85
    $region84: #{tpu_custom_call.1} parent=1 // pred_region
      %215 = dma.done [#allocation9], 256
    $region85: #{tpu_custom_call.1} parent=1 // pred_fallthru
      _
    // Predicated region
    $region86: #{tpu_custom_call.1} parent=1 // pred_check
      _
    $region87: #{tpu_custom_call.1} parent=1 // pred_check_branch
      %217 = sbr.rel (0) target = $region89
    $region88: #{tpu_custom_call.1} parent=1 // pred_region
      %218 = dma.done [#allocation12], 16
    $region89: #{tpu_custom_call.1} parent=1 // pred_fallthru
      _
    // Predicated region
    $region90: #{tpu_custom_call.1} parent=1 // pred_check
      _
    $region91: #{tpu_custom_call.1} parent=1 // pred_check_branch
      %220 = sbr.rel (0) target = $region93
    $region92: #{tpu_custom_call.1} parent=1 // pred_region
      %221 = dma.done [#allocation12], 16
    $region93: #{tpu_custom_call.1} parent=1 // pred_fallthru
      _
    // Predicated region
    $region94: #{tpu_custom_call.1} parent=1 // pred_check
      _
    $region95: #{tpu_custom_call.1} parent=1 // pred_check_branch
      %223 = sbr.rel (0) target = $region97
    $region96: #{tpu_custom_call.1} parent=1 // pred_region
      %224 = dma.done [#allocation15], 16
    $region97: #{tpu_custom_call.1} parent=1 // pred_fallthru
      _
    // Predicated region
    $region98: #{tpu_custom_call.1} parent=1 // pred_check
      _
    $region99: #{tpu_custom_call.1} parent=1 // pred_check_branch
      %226 = sbr.rel (0) target = $region101
    $region100: #{tpu_custom_call.1} parent=1 // pred_region
      %227 = dma.done [#allocation15], 16
    $region101: #{tpu_custom_call.1} parent=1 // pred_fallthru
      _
    // Predicated region
    $region102: #{tpu_custom_call.1} parent=1 // pred_check
      _
    $region103: #{tpu_custom_call.1} parent=1 // pred_check_branch
      %229 = sbr.rel (0) target = $region105
    $region104: #{tpu_custom_call.1} parent=1 // pred_region
      %230 = dma.done [#allocation18], 16
    $region105: #{tpu_custom_call.1} parent=1 // pred_fallthru
      _
    // Predicated region
    $region106: #{tpu_custom_call.1} parent=1 // pred_check
      _
    $region107: #{tpu_custom_call.1} parent=1 // pred_check_branch
      %232 = sbr.rel (0) target = $region109
    $region108: #{tpu_custom_call.1} parent=1 // pred_region
      %233 = dma.done [#allocation18], 256
    $region109: #{tpu_custom_call.1} parent=1 // pred_fallthru
      _
    // Predicated region
    $region110: #{tpu_custom_call.1} parent=1 // pred_check
      _
    $region111: #{tpu_custom_call.1} parent=1 // pred_check_branch
      %235 = sbr.rel (0) target = $region113
    $region112: #{tpu_custom_call.1} parent=1 // pred_region
      %236 = dma.done [#allocation21], 16
    $region113: #{tpu_custom_call.1} parent=1 // pred_fallthru
      _
    // Predicated region
    $region114: #{tpu_custom_call.1} parent=1 // pred_check
      _
    $region115: #{tpu_custom_call.1} parent=1 // pred_check_branch
      %238 = sbr.rel (0) target = $region117
    $region116: #{tpu_custom_call.1} parent=1 // pred_region
      %239 = dma.done [#allocation21], 1024
    $region117: #{tpu_custom_call.1} parent=1 // pred_fallthru
      _
    // Predicated region
    $region118: #{tpu_custom_call.1} parent=1 // pred_check
      _
    $region119: #{tpu_custom_call.1} parent=1 // pred_check_branch
      %241 = sbr.rel (0) target = $region121
    $region120: #{tpu_custom_call.1} parent=1 // pred_region
      %242 = dma.done [#allocation24], 16
    $region121: #{tpu_custom_call.1} parent=1 // pred_fallthru
      _
    // Predicated region
    $region122: #{tpu_custom_call.1} parent=1 // pred_check
      _
    $region123: #{tpu_custom_call.1} parent=1 // pred_check_branch
      %244 = sbr.rel (0) target = $region125
    $region124: #{tpu_custom_call.1} parent=1 // pred_region
      %245 = dma.done [#allocation24], 16
    $region125: #{tpu_custom_call.1} parent=1 // pred_fallthru
      _
    // Predicated region
    $region126: #{tpu_custom_call.1} parent=1 // pred_check
      _
    $region127: #{tpu_custom_call.1} parent=1 // pred_check_branch
      %247 = sbr.rel (0) target = $region129
    $region128: #{tpu_custom_call.1} parent=1 // pred_region
      %248 = dma.done [#allocation27], 16
    $region129: #{tpu_custom_call.1} parent=1 // pred_fallthru
      _
    %v250 = vld [vmem:[#allocation5] sm:$0x3]
    %v251 = vld [vmem:[#allocation2] sm:$0xff]
    %v252 = vld [vmem:[#allocation2 + $0x8] sm:$0xff]
    %v253 = vld [vmem:[#allocation13] sm:$0x1]
    %v254 = vld [vmem:[#allocation14] sm:$0x1]
    %vm255 = vcmask 261120
    %v256 = vsel %vm255, %v251, 0.0
    %257 = vadd.xlane.f32.xlu0 %v256
    %v258 = vpop.xlane.xlu0 %257
    %v259 = vsel %vm255, %v252, 0.0
    %260 = vadd.xlane.f32.xlu0 %v259
    %v261 = vpop.xlane.xlu0 %260
    %v262 = vrcp.pop 32.0
    %v263 = vmul.f32 %v258, %v262
    %v264 = vmul.f32 %v261, %v262
    %v265 = vsub.f32 %v251, %v263
    %v266 = vsub.f32 %v252, %v264
    %v267 = vmul.f32 %v265, %v265
    %v268 = vmul.f32 %v266, %v266
    %v269 = vsel %vm255, %v267, 0.0
    %270 = vadd.xlane.f32.xlu0 %v269
    %v271 = vpop.xlane.xlu0 %270
    %v272 = vsel %vm255, %v268, 0.0
    %273 = vadd.xlane.f32.xlu0 %v272
    %v274 = vpop.xlane.xlu0 %273
    %v275 = vmul.f32 %v271, %v262
    %v276 = vmul.f32 %v274, %v262
    %v277 = vadd.f32 %v275, 1e-12
    %v278 = vadd.f32 %v276, 1e-12
    %v279 = vrsqrt.pop %v277
    %v280 = vrsqrt.pop %v278
    %v281 = vmul.f32 %v265, %v279
    %v282 = vmul.f32 %v266, %v280
    %v284 = vlaneseq
    %v285 = vshrl.u32 %v284, 7
    %v286 = vsub.s32 0, %v285
    %v287 = vrot.slane %v253, %v286
    %v289 = vmul.f32 %v281, %v287
    %v290 = vmul.f32 %v282, %v287
    %v292 = vlaneseq
    %v293 = vshrl.u32 %v292, 7
    %v294 = vsub.s32 0, %v293
    %v295 = vrot.slane %v254, %v294
    %v297 = vadd.f32 %v289, %v295
    %v298 = vadd.f32 %v290, %v295
    %v299 = vpack.c.bf16 %v298, %v297
    %v300 = vld [vmem:[#allocation7] sm:$0xf]
    %v301 = vld [vmem:[#allocation7 + $0x4] sm:$0xf]
    %v302 = vld [vmem:[#allocation7 + $0x8] sm:$0xf]
    %v303 = vld [vmem:[#allocation7 + $0xc] sm:$0xf]
    %v304 = vld [vmem:[#allocation8] sm:$0x1]
    %v306 = vlaneseq
    %v307 = vshrl.u32 %v306, 7
    %v308 = vsub.s32 0, %v307
    %v309 = vrot.slane %v304, %v308
    %v315 = vunpack.c.l.b16 %v300
    %v316 = vunpack.c.l.b16 %v301
    %v317 = vunpack.c.l.b16 %v302
    %v318 = vunpack.c.l.b16 %v303
    %v319 = vpack.c.b16 %v316, %v315
    %v320 = vpack.c.b16 %v318, %v317
    %v324 = vsel %vm255, %v299, 0
    %326 = vmatprep.subr.bf16.mxu0 0
    %327 = vmatpush1.bf16.msra.mxu0 %v319
    %328 = vmatprep.subr.bf16.mxu0 0
    %329 = vmatpush1.bf16.msra.mxu0 %v320
    %330 = vmatprep.subr.bf16.mxu0 0
    %331 = vmatpush1.bf16.msra.mxu0 0
    %332 = vmatprep.subr.bf16.mxu0 0
    %333 = vmatpush1.bf16.msra.mxu0 0
    %334 = vmatprep.subr.bf16.mxu0 0
    %335 = vmatpush1.bf16.msra.mxu0 0
    %336 = vmatprep.subr.bf16.mxu0 0
    %337 = vmatpush1.bf16.msra.mxu0 0
    %338 = vmatprep.subr.bf16.mxu0 0
    %339 = vmatpush1.bf16.msra.mxu0 0
    %340 = vmatprep.subr.bf16.mxu0 0
    %341 = vmatpush1.bf16.msra.mxu0 0
    %342 = vmatprep.subr.bf16.mxu0 0
    %343 = vmatpush1.bf16.msra.mxu0 0
    %344 = vmatprep.subr.bf16.mxu0 0
    %345 = vmatpush1.bf16.msra.mxu0 0
    %346 = vmatprep.subr.bf16.mxu0 0
    %347 = vmatpush1.bf16.msra.mxu0 0
    %348 = vmatprep.subr.bf16.mxu0 0
    %349 = vmatpush1.bf16.msra.mxu0 0
    %350 = vmatprep.subr.bf16.mxu0 0
    %351 = vmatpush1.bf16.msra.mxu0 0
    %352 = vmatprep.subr.bf16.mxu0 0
    %353 = vmatpush1.bf16.msra.mxu0 0
    %354 = vmatprep.subr.bf16.mxu0 0
    %355 = vmatpush1.bf16.msra.mxu0 0
    %356 = vmatprep.subr.bf16.mxu0 0
    %357 = vmatpush1.bf16.msra.mxu0 0
    %358 = vmatprep.mubr.bf16.mxu0 0
    %359 = vmatmul.mubr.bf16.gmra.mrb[0].mxu0 %v324
    %v360 = vpop.f32.mrb[0].mxu0
    %v361 = vadd.f32 %v309, %v360
    %v362 = vpop.f32.mrb[0].mxu0
    %v363 = vpop.f32.mrb[0].mxu0
    %v364 = vadd.f32 %v309, %v363
    %v365 = vpop.f32.mrb[0].mxu0
    %366 = vdwg.mxu0
    %v367 = vpack.c.bf16 %v364, %v361
    %v369 = vunpack.c.l.b16 %v367
    %v370 = vunpack.c.h.b16 %v367
    %v371 = vpack.c.b16 %v369, %v369
    %v372 = vpack.c.b16 %v370, %v370
    %373 = vrot.lane.b32.xlu0 %v371, 120
    %v374 = vpop.permute.xlu0 %373
    %375 = vrot.lane.b32.xlu0 %v372, 120
    %v376 = vpop.permute.xlu0 %375
    %377 = vrot.lane.b32.xlu0 %v371, 112
    %v378 = vpop.permute.xlu0 %377
    %379 = vrot.lane.b32.xlu0 %v372, 112
    %v380 = vpop.permute.xlu0 %379
    %381 = vrot.lane.b32.xlu0 %v371, 104
    %v382 = vpop.permute.xlu0 %381
    %383 = vrot.lane.b32.xlu0 %v372, 104
    %v384 = vpop.permute.xlu0 %383
    %385 = vrot.lane.b32.xlu0 %v371, 96
    %v386 = vpop.permute.xlu0 %385
    %387 = vrot.lane.b32.xlu0 %v372, 96
    %v388 = vpop.permute.xlu0 %387
    %389 = vrot.lane.b32.xlu0 %v371, 88
    %v390 = vpop.permute.xlu0 %389
    %391 = vrot.lane.b32.xlu0 %v372, 88
    %v392 = vpop.permute.xlu0 %391
    %393 = vrot.lane.b32.xlu0 %v371, 80
    %v394 = vpop.permute.xlu0 %393
    %395 = vrot.lane.b32.xlu0 %v372, 80
    %v396 = vpop.permute.xlu0 %395
    %397 = vrot.lane.b32.xlu0 %v371, 72
    %v398 = vpop.permute.xlu0 %397
    %399 = vrot.lane.b32.xlu0 %v372, 72
    %v400 = vpop.permute.xlu0 %399
    %401 = vrot.lane.b32.xlu0 %v371, 64
    %v402 = vpop.permute.xlu0 %401
    %403 = vrot.lane.b32.xlu0 %v372, 64
    %v404 = vpop.permute.xlu0 %403
    %405 = vrot.lane.b32.xlu0 %v371, 56
    %v406 = vpop.permute.xlu0 %405
    %407 = vrot.lane.b32.xlu0 %v372, 56
    %v408 = vpop.permute.xlu0 %407
    %409 = vrot.lane.b32.xlu0 %v371, 48
    %v410 = vpop.permute.xlu0 %409
    %411 = vrot.lane.b32.xlu0 %v372, 48
    %v412 = vpop.permute.xlu0 %411
    %413 = vrot.lane.b32.xlu0 %v371, 40
    %v414 = vpop.permute.xlu0 %413
    %415 = vrot.lane.b32.xlu0 %v372, 40
    %v416 = vpop.permute.xlu0 %415
    %vm417 = vcmask 64512
    %v419 = vsel %vm417, %v371, 0
    %v422 = vsel %vm417, %v386, 0
    %424 = vmatprep.subr.bf16.mxu0 0
    %425 = vmatpush1.bf16.xpose.msra.mxu0 %v422
    %426 = vmatprep.subr.bf16.mxu0 0
    %427 = vmatpush1.bf16.xpose.msra.mxu0 0
    %428 = vmatprep.subr.bf16.mxu0 0
    %429 = vmatpush1.bf16.xpose.msra.mxu0 0
    %430 = vmatprep.subr.bf16.mxu0 0
    %431 = vmatpush1.bf16.xpose.msra.mxu0 0
    %432 = vmatprep.subr.bf16.mxu0 0
    %433 = vmatpush1.bf16.xpose.msra.mxu0 0
    %434 = vmatprep.subr.bf16.mxu0 0
    %435 = vmatpush1.bf16.xpose.msra.mxu0 0
    %436 = vmatprep.subr.bf16.mxu0 0
    %437 = vmatpush1.bf16.xpose.msra.mxu0 0
    %438 = vmatprep.subr.bf16.mxu0 0
    %439 = vmatpush1.bf16.xpose.msra.mxu0 0
    %440 = vmatprep.subr.bf16.mxu0 0
    %441 = vmatpush1.bf16.xpose.msra.mxu0 0
    %442 = vmatprep.subr.bf16.mxu0 0
    %443 = vmatpush1.bf16.xpose.msra.mxu0 0
    %444 = vmatprep.subr.bf16.mxu0 0
    %445 = vmatpush1.bf16.xpose.msra.mxu0 0
    %446 = vmatprep.subr.bf16.mxu0 0
    %447 = vmatpush1.bf16.xpose.msra.mxu0 0
    %448 = vmatprep.subr.bf16.mxu0 0
    %449 = vmatpush1.bf16.xpose.msra.mxu0 0
    %450 = vmatprep.subr.bf16.mxu0 0
    %451 = vmatpush1.bf16.xpose.msra.mxu0 0
    %452 = vmatprep.subr.bf16.mxu0 0
    %453 = vmatpush1.bf16.xpose.msra.mxu0 0
    %454 = vmatprep.subr.bf16.mxu0 0
    %455 = vmatpush1.bf16.xpose.msra.mxu0 0
    %456 = vmatprep.mubr.bf16.mxu0 0
    %457 = vmatmul.mubr.bf16.gmra.mrb[0].mxu0 %v419
    %v458 = vpop.f32.mrb[0].mxu0
    %v459 = vadd.f32 0.0, %v458
    %v460 = vpop.f32.mrb[0].mxu0
    %v461 = vpop.f32.mrb[0].mxu0
    %v462 = vpop.f32.mrb[0].mxu0
    %463 = vdwg.mxu0
    %v465 = vsel %vm417, %v372, 0
    %v468 = vsel %vm417, %v388, 0
    %470 = vmatprep.subr.bf16.mxu0 0
    %471 = vmatpush1.bf16.xpose.msra.mxu0 %v468
    %472 = vmatprep.subr.bf16.mxu0 0
    %473 = vmatpush1.bf16.xpose.msra.mxu0 0
    %474 = vmatprep.subr.bf16.mxu0 0
    %475 = vmatpush1.bf16.xpose.msra.mxu0 0
    %476 = vmatprep.subr.bf16.mxu0 0
    %477 = vmatpush1.bf16.xpose.msra.mxu0 0
    %478 = vmatprep.subr.bf16.mxu0 0
    %479 = vmatpush1.bf16.xpose.msra.mxu0 0
    %480 = vmatprep.subr.bf16.mxu0 0
    %481 = vmatpush1.bf16.xpose.msra.mxu0 0
    %482 = vmatprep.subr.bf16.mxu0 0
    %483 = vmatpush1.bf16.xpose.msra.mxu0 0
    %484 = vmatprep.subr.bf16.mxu0 0
    %485 = vmatpush1.bf16.xpose.msra.mxu0 0
    %486 = vmatprep.subr.bf16.mxu0 0
    %487 = vmatpush1.bf16.xpose.msra.mxu0 0
    %488 = vmatprep.subr.bf16.mxu0 0
    %489 = vmatpush1.bf16.xpose.msra.mxu0 0
    %490 = vmatprep.subr.bf16.mxu0 0
    %491 = vmatpush1.bf16.xpose.msra.mxu0 0
    %492 = vmatprep.subr.bf16.mxu0 0
    %493 = vmatpush1.bf16.xpose.msra.mxu0 0
    %494 = vmatprep.subr.bf16.mxu0 0
    %495 = vmatpush1.bf16.xpose.msra.mxu0 0
    %496 = vmatprep.subr.bf16.mxu0 0
    %497 = vmatpush1.bf16.xpose.msra.mxu0 0
    %498 = vmatprep.subr.bf16.mxu0 0
    %499 = vmatpush1.bf16.xpose.msra.mxu0 0
    %500 = vmatprep.subr.bf16.mxu0 0
    %501 = vmatpush1.bf16.xpose.msra.mxu0 0
    %502 = vmatprep.mubr.bf16.mxu0 0
    %503 = vmatmul.mubr.bf16.gmra.mrb[0].mxu0 %v465
    %v504 = vpop.f32.mrb[0].mxu0
    %v505 = vadd.f32 0.0, %v504
    %v506 = vpop.f32.mrb[0].mxu0
    %v507 = vpop.f32.mrb[0].mxu0
    %v508 = vpop.f32.mrb[0].mxu0
    %509 = vdwg.mxu0
    %v511 = vsel %vm417, %v374, 0
    %v514 = vsel %vm417, %v390, 0
    %516 = vmatprep.subr.bf16.mxu0 0
    %517 = vmatpush1.bf16.xpose.msra.mxu0 %v514
    %518 = vmatprep.subr.bf16.mxu0 0
    %519 = vmatpush1.bf16.xpose.msra.mxu0 0
    %520 = vmatprep.subr.bf16.mxu0 0
    %521 = vmatpush1.bf16.xpose.msra.mxu0 0
    %522 = vmatprep.subr.bf16.mxu0 0
    %523 = vmatpush1.bf16.xpose.msra.mxu0 0
    %524 = vmatprep.subr.bf16.mxu0 0
    %525 = vmatpush1.bf16.xpose.msra.mxu0 0
    %526 = vmatprep.subr.bf16.mxu0 0
    %527 = vmatpush1.bf16.xpose.msra.mxu0 0
    %528 = vmatprep.subr.bf16.mxu0 0
    %529 = vmatpush1.bf16.xpose.msra.mxu0 0
    %530 = vmatprep.subr.bf16.mxu0 0
    %531 = vmatpush1.bf16.xpose.msra.mxu0 0
    %532 = vmatprep.subr.bf16.mxu0 0
    %533 = vmatpush1.bf16.xpose.msra.mxu0 0
    %534 = vmatprep.subr.bf16.mxu0 0
    %535 = vmatpush1.bf16.xpose.msra.mxu0 0
    %536 = vmatprep.subr.bf16.mxu0 0
    %537 = vmatpush1.bf16.xpose.msra.mxu0 0
    %538 = vmatprep.subr.bf16.mxu0 0
    %539 = vmatpush1.bf16.xpose.msra.mxu0 0
    %540 = vmatprep.subr.bf16.mxu0 0
    %541 = vmatpush1.bf16.xpose.msra.mxu0 0
    %542 = vmatprep.subr.bf16.mxu0 0
    %543 = vmatpush1.bf16.xpose.msra.mxu0 0
    %544 = vmatprep.subr.bf16.mxu0 0
    %545 = vmatpush1.bf16.xpose.msra.mxu0 0
    %546 = vmatprep.subr.bf16.mxu0 0
    %547 = vmatpush1.bf16.xpose.msra.mxu0 0
    %548 = vmatprep.mubr.bf16.mxu0 0
    %549 = vmatmul.mubr.bf16.gmra.mrb[0].mxu0 %v511
    %v550 = vpop.f32.mrb[0].mxu0
    %v551 = vadd.f32 0.0, %v550
    %v552 = vpop.f32.mrb[0].mxu0
    %v553 = vpop.f32.mrb[0].mxu0
    %v554 = vpop.f32.mrb[0].mxu0
    %555 = vdwg.mxu0
    %v557 = vsel %vm417, %v376, 0
    %v560 = vsel %vm417, %v392, 0
    %562 = vmatprep.subr.bf16.mxu0 0
    %563 = vmatpush1.bf16.xpose.msra.mxu0 %v560
    %564 = vmatprep.subr.bf16.mxu0 0
    %565 = vmatpush1.bf16.xpose.msra.mxu0 0
    %566 = vmatprep.subr.bf16.mxu0 0
    %567 = vmatpush1.bf16.xpose.msra.mxu0 0
    %568 = vmatprep.subr.bf16.mxu0 0
    %569 = vmatpush1.bf16.xpose.msra.mxu0 0
    %570 = vmatprep.subr.bf16.mxu0 0
    %571 = vmatpush1.bf16.xpose.msra.mxu0 0
    %572 = vmatprep.subr.bf16.mxu0 0
    %573 = vmatpush1.bf16.xpose.msra.mxu0 0
    %574 = vmatprep.subr.bf16.mxu0 0
    %575 = vmatpush1.bf16.xpose.msra.mxu0 0
    %576 = vmatprep.subr.bf16.mxu0 0
    %577 = vmatpush1.bf16.xpose.msra.mxu0 0
    %578 = vmatprep.subr.bf16.mxu0 0
    %579 = vmatpush1.bf16.xpose.msra.mxu0 0
    %580 = vmatprep.subr.bf16.mxu0 0
    %581 = vmatpush1.bf16.xpose.msra.mxu0 0
    %582 = vmatprep.subr.bf16.mxu0 0
    %583 = vmatpush1.bf16.xpose.msra.mxu0 0
    %584 = vmatprep.subr.bf16.mxu0 0
    %585 = vmatpush1.bf16.xpose.msra.mxu0 0
    %586 = vmatprep.subr.bf16.mxu0 0
    %587 = vmatpush1.bf16.xpose.msra.mxu0 0
    %588 = vmatprep.subr.bf16.mxu0 0
    %589 = vmatpush1.bf16.xpose.msra.mxu0 0
    %590 = vmatprep.subr.bf16.mxu0 0
    %591 = vmatpush1.bf16.xpose.msra.mxu0 0
    %592 = vmatprep.subr.bf16.mxu0 0
    %593 = vmatpush1.bf16.xpose.msra.mxu0 0
    %594 = vmatprep.mubr.bf16.mxu0 0
    %595 = vmatmul.mubr.bf16.gmra.mrb[0].mxu0 %v557
    %v596 = vpop.f32.mrb[0].mxu0
    %v597 = vadd.f32 0.0, %v596
    %v598 = vpop.f32.mrb[0].mxu0
    %v599 = vpop.f32.mrb[0].mxu0
    %v600 = vpop.f32.mrb[0].mxu0
    %601 = vdwg.mxu0
    %v603 = vsel %vm417, %v378, 0
    %v606 = vsel %vm417, %v394, 0
    %608 = vmatprep.subr.bf16.mxu0 0
    %609 = vmatpush1.bf16.xpose.msra.mxu0 %v606
    %610 = vmatprep.subr.bf16.mxu0 0
    %611 = vmatpush1.bf16.xpose.msra.mxu0 0
    %612 = vmatprep.subr.bf16.mxu0 0
    %613 = vmatpush1.bf16.xpose.msra.mxu0 0
    %614 = vmatprep.subr.bf16.mxu0 0
    %615 = vmatpush1.bf16.xpose.msra.mxu0 0
    %616 = vmatprep.subr.bf16.mxu0 0
    %617 = vmatpush1.bf16.xpose.msra.mxu0 0
    %618 = vmatprep.subr.bf16.mxu0 0
    %619 = vmatpush1.bf16.xpose.msra.mxu0 0
    %620 = vmatprep.subr.bf16.mxu0 0
    %621 = vmatpush1.bf16.xpose.msra.mxu0 0
    %622 = vmatprep.subr.bf16.mxu0 0
    %623 = vmatpush1.bf16.xpose.msra.mxu0 0
    %624 = vmatprep.subr.bf16.mxu0 0
    %625 = vmatpush1.bf16.xpose.msra.mxu0 0
    %626 = vmatprep.subr.bf16.mxu0 0
    %627 = vmatpush1.bf16.xpose.msra.mxu0 0
    %628 = vmatprep.subr.bf16.mxu0 0
    %629 = vmatpush1.bf16.xpose.msra.mxu0 0
    %630 = vmatprep.subr.bf16.mxu0 0
    %631 = vmatpush1.bf16.xpose.msra.mxu0 0
    %632 = vmatprep.subr.bf16.mxu0 0
    %633 = vmatpush1.bf16.xpose.msra.mxu0 0
    %634 = vmatprep.subr.bf16.mxu0 0
    %635 = vmatpush1.bf16.xpose.msra.mxu0 0
    %636 = vmatprep.subr.bf16.mxu0 0
    %637 = vmatpush1.bf16.xpose.msra.mxu0 0
    %638 = vmatprep.subr.bf16.mxu0 0
    %639 = vmatpush1.bf16.xpose.msra.mxu0 0
    %640 = vmatprep.mubr.bf16.mxu0 0
    %641 = vmatmul.mubr.bf16.gmra.mrb[0].mxu0 %v603
    %v642 = vpop.f32.mrb[0].mxu0
    %v643 = vadd.f32 0.0, %v642
    %v644 = vpop.f32.mrb[0].mxu0
    %v645 = vpop.f32.mrb[0].mxu0
    %v646 = vpop.f32.mrb[0].mxu0
    %647 = vdwg.mxu0
    %v649 = vsel %vm417, %v380, 0
    %v652 = vsel %vm417, %v396, 0
    %654 = vmatprep.subr.bf16.mxu0 0
    %655 = vmatpush1.bf16.xpose.msra.mxu0 %v652
    %656 = vmatprep.subr.bf16.mxu0 0
    %657 = vmatpush1.bf16.xpose.msra.mxu0 0
    %658 = vmatprep.subr.bf16.mxu0 0
    %659 = vmatpush1.bf16.xpose.msra.mxu0 0
    %660 = vmatprep.subr.bf16.mxu0 0
    %661 = vmatpush1.bf16.xpose.msra.mxu0 0
    %662 = vmatprep.subr.bf16.mxu0 0
    %663 = vmatpush1.bf16.xpose.msra.mxu0 0
    %664 = vmatprep.subr.bf16.mxu0 0
    %665 = vmatpush1.bf16.xpose.msra.mxu0 0
    %666 = vmatprep.subr.bf16.mxu0 0
    %667 = vmatpush1.bf16.xpose.msra.mxu0 0
    %668 = vmatprep.subr.bf16.mxu0 0
    %669 = vmatpush1.bf16.xpose.msra.mxu0 0
    %670 = vmatprep.subr.bf16.mxu0 0
    %671 = vmatpush1.bf16.xpose.msra.mxu0 0
    %672 = vmatprep.subr.bf16.mxu0 0
    %673 = vmatpush1.bf16.xpose.msra.mxu0 0
    %674 = vmatprep.subr.bf16.mxu0 0
    %675 = vmatpush1.bf16.xpose.msra.mxu0 0
    %676 = vmatprep.subr.bf16.mxu0 0
    %677 = vmatpush1.bf16.xpose.msra.mxu0 0
    %678 = vmatprep.subr.bf16.mxu0 0
    %679 = vmatpush1.bf16.xpose.msra.mxu0 0
    %680 = vmatprep.subr.bf16.mxu0 0
    %681 = vmatpush1.bf16.xpose.msra.mxu0 0
    %682 = vmatprep.subr.bf16.mxu0 0
    %683 = vmatpush1.bf16.xpose.msra.mxu0 0
    %684 = vmatprep.subr.bf16.mxu0 0
    %685 = vmatpush1.bf16.xpose.msra.mxu0 0
    %686 = vmatprep.mubr.bf16.mxu0 0
    %687 = vmatmul.mubr.bf16.gmra.mrb[0].mxu0 %v649
    %v688 = vpop.f32.mrb[0].mxu0
    %v689 = vadd.f32 0.0, %v688
    %v690 = vpop.f32.mrb[0].mxu0
    %v691 = vpop.f32.mrb[0].mxu0
    %v692 = vpop.f32.mrb[0].mxu0
    %693 = vdwg.mxu0
    %v695 = vsel %vm417, %v382, 0
    %v698 = vsel %vm417, %v398, 0
    %700 = vmatprep.subr.bf16.mxu0 0
    %701 = vmatpush1.bf16.xpose.msra.mxu0 %v698
    %702 = vmatprep.subr.bf16.mxu0 0
    %703 = vmatpush1.bf16.xpose.msra.mxu0 0
    %704 = vmatprep.subr.bf16.mxu0 0
    %705 = vmatpush1.bf16.xpose.msra.mxu0 0
    %706 = vmatprep.subr.bf16.mxu0 0
    %707 = vmatpush1.bf16.xpose.msra.mxu0 0
    %708 = vmatprep.subr.bf16.mxu0 0
    %709 = vmatpush1.bf16.xpose.msra.mxu0 0
    %710 = vmatprep.subr.bf16.mxu0 0
    %711 = vmatpush1.bf16.xpose.msra.mxu0 0
    %712 = vmatprep.subr.bf16.mxu0 0
    %713 = vmatpush1.bf16.xpose.msra.mxu0 0
    %714 = vmatprep.subr.bf16.mxu0 0
    %715 = vmatpush1.bf16.xpose.msra.mxu0 0
    %716 = vmatprep.subr.bf16.mxu0 0
    %717 = vmatpush1.bf16.xpose.msra.mxu0 0
    %718 = vmatprep.subr.bf16.mxu0 0
    %719 = vmatpush1.bf16.xpose.msra.mxu0 0
    %720 = vmatprep.subr.bf16.mxu0 0
    %721 = vmatpush1.bf16.xpose.msra.mxu0 0
    %722 = vmatprep.subr.bf16.mxu0 0
    %723 = vmatpush1.bf16.xpose.msra.mxu0 0
    %724 = vmatprep.subr.bf16.mxu0 0
    %725 = vmatpush1.bf16.xpose.msra.mxu0 0
    %726 = vmatprep.subr.bf16.mxu0 0
    %727 = vmatpush1.bf16.xpose.msra.mxu0 0
    %728 = vmatprep.subr.bf16.mxu0 0
    %729 = vmatpush1.bf16.xpose.msra.mxu0 0
    %730 = vmatprep.subr.bf16.mxu0 0
    %731 = vmatpush1.bf16.xpose.msra.mxu0 0
    %732 = vmatprep.mubr.bf16.mxu0 0
    %733 = vmatmul.mubr.bf16.gmra.mrb[0].mxu0 %v695
    %v734 = vpop.f32.mrb[0].mxu0
    %v735 = vadd.f32 0.0, %v734
    %v736 = vpop.f32.mrb[0].mxu0
    %v737 = vpop.f32.mrb[0].mxu0
    %v738 = vpop.f32.mrb[0].mxu0
    %739 = vdwg.mxu0
    %v741 = vsel %vm417, %v384, 0
    %v744 = vsel %vm417, %v400, 0
    %746 = vmatprep.subr.bf16.mxu0 0
    %747 = vmatpush1.bf16.xpose.msra.mxu0 %v744
    %748 = vmatprep.subr.bf16.mxu0 0
    %749 = vmatpush1.bf16.xpose.msra.mxu0 0
    %750 = vmatprep.subr.bf16.mxu0 0
    %751 = vmatpush1.bf16.xpose.msra.mxu0 0
    %752 = vmatprep.subr.bf16.mxu0 0
    %753 = vmatpush1.bf16.xpose.msra.mxu0 0
    %754 = vmatprep.subr.bf16.mxu0 0
    %755 = vmatpush1.bf16.xpose.msra.mxu0 0
    %756 = vmatprep.subr.bf16.mxu0 0
    %757 = vmatpush1.bf16.xpose.msra.mxu0 0
    %758 = vmatprep.subr.bf16.mxu0 0
    %759 = vmatpush1.bf16.xpose.msra.mxu0 0
    %760 = vmatprep.subr.bf16.mxu0 0
    %761 = vmatpush1.bf16.xpose.msra.mxu0 0
    %762 = vmatprep.subr.bf16.mxu0 0
    %763 = vmatpush1.bf16.xpose.msra.mxu0 0
    %764 = vmatprep.subr.bf16.mxu0 0
    %765 = vmatpush1.bf16.xpose.msra.mxu0 0
    %766 = vmatprep.subr.bf16.mxu0 0
    %767 = vmatpush1.bf16.xpose.msra.mxu0 0
    %768 = vmatprep.subr.bf16.mxu0 0
    %769 = vmatpush1.bf16.xpose.msra.mxu0 0
    %770 = vmatprep.subr.bf16.mxu0 0
    %771 = vmatpush1.bf16.xpose.msra.mxu0 0
    %772 = vmatprep.subr.bf16.mxu0 0
    %773 = vmatpush1.bf16.xpose.msra.mxu0 0
    %774 = vmatprep.subr.bf16.mxu0 0
    %775 = vmatpush1.bf16.xpose.msra.mxu0 0
    %776 = vmatprep.subr.bf16.mxu0 0
    %777 = vmatpush1.bf16.xpose.msra.mxu0 0
    %778 = vmatprep.mubr.bf16.mxu0 0
    %779 = vmatmul.mubr.bf16.gmra.mrb[0].mxu0 %v741
    %v780 = vpop.f32.mrb[0].mxu0
    %v781 = vadd.f32 0.0, %v780
    %v782 = vpop.f32.mrb[0].mxu0
    %v783 = vpop.f32.mrb[0].mxu0
    %v784 = vpop.f32.mrb[0].mxu0
    %785 = vdwg.mxu0
    %v788 = vunpack.c.l.s4 1966171168
    %v789 = vunpack.c.0.s8 %v788
    %v790 = vlaneseq
    %v791 = vshrl.u32 %v790, 7
    %v792 = vsub.s32 %v789, %v791
    %v793 = vrot.slane %v250, %v792
    %v794 = vcombine.high %v793, %v793
    %v796 = vunpack.c.l.s4 1966171168
    %v797 = vunpack.c.0.s8 %v796
    %v798 = vlaneseq
    %v799 = vshrl.u32 %v798, 7
    %v800 = vsub.s32 %v797, %v799
    %v801 = vrot.slane %v793, %v800
    %v803 = vunpack.c.l.s4 1966171168
    %v804 = vunpack.c.0.s8 %v803
    %v805 = vlaneseq
    %v806 = vshrl.u32 %v805, 7
    %v807 = vsub.s32 %v804, %v806
    %v808 = vrot.slane %v794, %v807
    %v809 = vlaneseq
    %v810 = vshrl.u32 %v809, 7
    %v811 = vsub.s32 0, %v810
    %v812 = vrot.slane %v801, %v811
    %v813 = vlaneseq
    %v814 = vshrl.u32 %v813, 7
    %v815 = vsub.s32 0, %v814
    %v816 = vrot.slane %v808, %v815
    %v819 = vadd.f32 %v459, %v812
    %v820 = vadd.f32 %v505, %v816
    %v821 = vadd.f32 %v551, %v812
    %v822 = vadd.f32 %v597, %v816
    %v823 = vadd.f32 %v643, %v812
    %v824 = vadd.f32 %v689, %v816
    %v825 = vadd.f32 %v735, %v812
    %v826 = vadd.f32 %v781, %v816
    %v827 = vsel %vm417, %v819, -inf
    %828 = vmax.xlane.f32.xlu0 %v827
    %v829 = vpop.xlane.xlu0 %828
    %v830 = vsel %vm417, %v820, -inf
    %831 = vmax.xlane.f32.xlu0 %v830
    %v832 = vpop.xlane.xlu0 %831
    %v833 = vsel %vm417, %v821, -inf
    %834 = vmax.xlane.f32.xlu0 %v833
    %v835 = vpop.xlane.xlu0 %834
    %v836 = vsel %vm417, %v822, -inf
    %837 = vmax.xlane.f32.xlu0 %v836
    %v838 = vpop.xlane.xlu0 %837
    %v839 = vsel %vm417, %v823, -inf
    %840 = vmax.xlane.f32.xlu0 %v839
    %v841 = vpop.xlane.xlu0 %840
    %v842 = vsel %vm417, %v824, -inf
    %843 = vmax.xlane.f32.xlu0 %v842
    %v844 = vpop.xlane.xlu0 %843
    %v845 = vsel %vm417, %v825, -inf
    %846 = vmax.xlane.f32.xlu0 %v845
    %v847 = vpop.xlane.xlu0 %846
    %v848 = vsel %vm417, %v826, -inf
    %849 = vmax.xlane.f32.xlu0 %v848
    %v850 = vpop.xlane.xlu0 %849
    %v851 = vsub.f32 %v819, %v829
    %v852 = vsub.f32 %v820, %v832
    %v853 = vsub.f32 %v821, %v835
    %v854 = vsub.f32 %v822, %v838
    %v855 = vsub.f32 %v823, %v841
    %v856 = vsub.f32 %v824, %v844
    %v857 = vsub.f32 %v825, %v847
    %v858 = vsub.f32 %v826, %v850
    %v859 = vmul.f32 %v851, 1.442695
    %v860 = vpow.pop %v859
    %v861 = vmul.f32 %v852, 1.442695
    %v862 = vpow.pop %v861
    %v863 = vmul.f32 %v853, 1.442695
    %v864 = vpow.pop %v863
    %v865 = vmul.f32 %v854, 1.442695
    %v866 = vpow.pop %v865
    %v867 = vmul.f32 %v855, 1.442695
    %v868 = vpow.pop %v867
    %v869 = vmul.f32 %v856, 1.442695
    %v870 = vpow.pop %v869
    %v871 = vmul.f32 %v857, 1.442695
    %v872 = vpow.pop %v871
    %v873 = vmul.f32 %v858, 1.442695
    %v874 = vpow.pop %v873
    %v875 = vsel %vm417, %v860, 0.0
    %876 = vadd.xlane.f32.xlu0 %v875
    %v877 = vpop.xlane.xlu0 %876
    %v878 = vsel %vm417, %v862, 0.0
    %879 = vadd.xlane.f32.xlu0 %v878
    %v880 = vpop.xlane.xlu0 %879
    %v881 = vsel %vm417, %v864, 0.0
    %882 = vadd.xlane.f32.xlu0 %v881
    %v883 = vpop.xlane.xlu0 %882
    %v884 = vsel %vm417, %v866, 0.0
    %885 = vadd.xlane.f32.xlu0 %v884
    %v886 = vpop.xlane.xlu0 %885
    %v887 = vsel %vm417, %v868, 0.0
    %888 = vadd.xlane.f32.xlu0 %v887
    %v889 = vpop.xlane.xlu0 %888
    %v890 = vsel %vm417, %v870, 0.0
    %891 = vadd.xlane.f32.xlu0 %v890
    %v892 = vpop.xlane.xlu0 %891
    %v893 = vsel %vm417, %v872, 0.0
    %894 = vadd.xlane.f32.xlu0 %v893
    %v895 = vpop.xlane.xlu0 %894
    %v896 = vsel %vm417, %v874, 0.0
    %897 = vadd.xlane.f32.xlu0 %v896
    %v898 = vpop.xlane.xlu0 %897
    %v899 = vrcp.pop %v877
    %v900 = vrcp.pop %v880
    %v901 = vrcp.pop %v883
    %v902 = vrcp.pop %v886
    %v903 = vrcp.pop %v889
    %v904 = vrcp.pop %v892
    %v905 = vrcp.pop %v895
    %v906 = vrcp.pop %v898
    %v907 = vmul.f32 %v860, %v899
    %v908 = vmul.f32 %v862, %v900
    %v909 = vmul.f32 %v864, %v901
    %v910 = vmul.f32 %v866, %v902
    %v911 = vmul.f32 %v868, %v903
    %v912 = vmul.f32 %v870, %v904
    %v913 = vmul.f32 %v872, %v905
    %v914 = vmul.f32 %v874, %v906
    %v915 = vpack.c.bf16 %v907, %v907
    %v916 = vpack.c.bf16 %v908, %v908
    %v917 = vpack.c.bf16 %v909, %v909
    %v918 = vpack.c.bf16 %v910, %v910
    %v919 = vpack.c.bf16 %v911, %v911
    %v920 = vpack.c.bf16 %v912, %v912
    %v921 = vpack.c.bf16 %v913, %v913
    %v922 = vpack.c.bf16 %v914, %v914
    %v924 = vsel %vm417, %v915, 0
    %vm926 = vcmask 1043456
    %v928 = vsel %vm926, %v402, 0
    %930 = vmatprep.subr.bf16.mxu0 0
    %931 = vmatpush1.bf16.msra.mxu0 %v928
    %932 = vmatprep.subr.bf16.mxu0 0
    %933 = vmatpush1.bf16.msra.mxu0 0
    %934 = vmatprep.subr.bf16.mxu0 0
    %935 = vmatpush1.bf16.msra.mxu0 0
    %936 = vmatprep.subr.bf16.mxu0 0
    %937 = vmatpush1.bf16.msra.mxu0 0
    %938 = vmatprep.subr.bf16.mxu0 0
    %939 = vmatpush1.bf16.msra.mxu0 0
    %940 = vmatprep.subr.bf16.mxu0 0
    %941 = vmatpush1.bf16.msra.mxu0 0
    %942 = vmatprep.subr.bf16.mxu0 0
    %943 = vmatpush1.bf16.msra.mxu0 0
    %944 = vmatprep.subr.bf16.mxu0 0
    %945 = vmatpush1.bf16.msra.mxu0 0
    %946 = vmatprep.subr.bf16.mxu0 0
    %947 = vmatpush1.bf16.msra.mxu0 0
    %948 = vmatprep.subr.bf16.mxu0 0
    %949 = vmatpush1.bf16.msra.mxu0 0
    %950 = vmatprep.subr.bf16.mxu0 0
    %951 = vmatpush1.bf16.msra.mxu0 0
    %952 = vmatprep.subr.bf16.mxu0 0
    %953 = vmatpush1.bf16.msra.mxu0 0
    %954 = vmatprep.subr.bf16.mxu0 0
    %955 = vmatpush1.bf16.msra.mxu0 0
    %956 = vmatprep.subr.bf16.mxu0 0
    %957 = vmatpush1.bf16.msra.mxu0 0
    %958 = vmatprep.subr.bf16.mxu0 0
    %959 = vmatpush1.bf16.msra.mxu0 0
    %960 = vmatprep.subr.bf16.mxu0 0
    %961 = vmatpush1.bf16.msra.mxu0 0
    %962 = vmatprep.mubr.bf16.mxu0 0
    %963 = vmatmul.mubr.bf16.gmra.mrb[0].mxu0 %v924
    %v964 = vpop.f32.mrb[0].mxu0
    %v965 = vadd.f32 0.0, %v964
    %v966 = vpop.f32.mrb[0].mxu0
    %v967 = vpop.f32.mrb[0].mxu0
    %v968 = vpop.f32.mrb[0].mxu0
    %969 = vdwg.mxu0
    %v971 = vsel %vm417, %v916, 0
    %v974 = vsel %vm926, %v404, 0
    %976 = vmatprep.subr.bf16.mxu0 0
    %977 = vmatpush1.bf16.msra.mxu0 %v974
    %978 = vmatprep.subr.bf16.mxu0 0
    %979 = vmatpush1.bf16.msra.mxu0 0
    %980 = vmatprep.subr.bf16.mxu0 0
    %981 = vmatpush1.bf16.msra.mxu0 0
    %982 = vmatprep.subr.bf16.mxu0 0
    %983 = vmatpush1.bf16.msra.mxu0 0
    %984 = vmatprep.subr.bf16.mxu0 0
    %985 = vmatpush1.bf16.msra.mxu0 0
    %986 = vmatprep.subr.bf16.mxu0 0
    %987 = vmatpush1.bf16.msra.mxu0 0
    %988 = vmatprep.subr.bf16.mxu0 0
    %989 = vmatpush1.bf16.msra.mxu0 0
    %990 = vmatprep.subr.bf16.mxu0 0
    %991 = vmatpush1.bf16.msra.mxu0 0
    %992 = vmatprep.subr.bf16.mxu0 0
    %993 = vmatpush1.bf16.msra.mxu0 0
    %994 = vmatprep.subr.bf16.mxu0 0
    %995 = vmatpush1.bf16.msra.mxu0 0
    %996 = vmatprep.subr.bf16.mxu0 0
    %997 = vmatpush1.bf16.msra.mxu0 0
    %998 = vmatprep.subr.bf16.mxu0 0
    %999 = vmatpush1.bf16.msra.mxu0 0
    %1000 = vmatprep.subr.bf16.mxu0 0
    %1001 = vmatpush1.bf16.msra.mxu0 0
    %1002 = vmatprep.subr.bf16.mxu0 0
    %1003 = vmatpush1.bf16.msra.mxu0 0
    %1004 = vmatprep.subr.bf16.mxu0 0
    %1005 = vmatpush1.bf16.msra.mxu0 0
    %1006 = vmatprep.subr.bf16.mxu0 0
    %1007 = vmatpush1.bf16.msra.mxu0 0
    %1008 = vmatprep.mubr.bf16.mxu0 0
    %1009 = vmatmul.mubr.bf16.gmra.mrb[0].mxu0 %v971
    %v1010 = vpop.f32.mrb[0].mxu0
    %v1011 = vadd.f32 0.0, %v1010
    %v1012 = vpop.f32.mrb[0].mxu0
    %v1013 = vpop.f32.mrb[0].mxu0
    %v1014 = vpop.f32.mrb[0].mxu0
    %1015 = vdwg.mxu0
    %v1017 = vsel %vm417, %v917, 0
    %v1020 = vsel %vm926, %v406, 0
    %1022 = vmatprep.subr.bf16.mxu0 0
    %1023 = vmatpush1.bf16.msra.mxu0 %v1020
    %1024 = vmatprep.subr.bf16.mxu0 0
    %1025 = vmatpush1.bf16.msra.mxu0 0
    %1026 = vmatprep.subr.bf16.mxu0 0
    %1027 = vmatpush1.bf16.msra.mxu0 0
    %1028 = vmatprep.subr.bf16.mxu0 0
    %1029 = vmatpush1.bf16.msra.mxu0 0
    %1030 = vmatprep.subr.bf16.mxu0 0
    %1031 = vmatpush1.bf16.msra.mxu0 0
    %1032 = vmatprep.subr.bf16.mxu0 0
    %1033 = vmatpush1.bf16.msra.mxu0 0
    %1034 = vmatprep.subr.bf16.mxu0 0
    %1035 = vmatpush1.bf16.msra.mxu0 0
    %1036 = vmatprep.subr.bf16.mxu0 0
    %1037 = vmatpush1.bf16.msra.mxu0 0
    %1038 = vmatprep.subr.bf16.mxu0 0
    %1039 = vmatpush1.bf16.msra.mxu0 0
    %1040 = vmatprep.subr.bf16.mxu0 0
    %1041 = vmatpush1.bf16.msra.mxu0 0
    %1042 = vmatprep.subr.bf16.mxu0 0
    %1043 = vmatpush1.bf16.msra.mxu0 0
    %1044 = vmatprep.subr.bf16.mxu0 0
    %1045 = vmatpush1.bf16.msra.mxu0 0
    %1046 = vmatprep.subr.bf16.mxu0 0
    %1047 = vmatpush1.bf16.msra.mxu0 0
    %1048 = vmatprep.subr.bf16.mxu0 0
    %1049 = vmatpush1.bf16.msra.mxu0 0
    %1050 = vmatprep.subr.bf16.mxu0 0
    %1051 = vmatpush1.bf16.msra.mxu0 0
    %1052 = vmatprep.subr.bf16.mxu0 0
    %1053 = vmatpush1.bf16.msra.mxu0 0
    %1054 = vmatprep.mubr.bf16.mxu0 0
    %1055 = vmatmul.mubr.bf16.gmra.mrb[0].mxu0 %v1017
    %v1056 = vpop.f32.mrb[0].mxu0
    %v1057 = vadd.f32 0.0, %v1056
    %v1058 = vpop.f32.mrb[0].mxu0
    %v1059 = vpop.f32.mrb[0].mxu0
    %v1060 = vpop.f32.mrb[0].mxu0
    %1061 = vdwg.mxu0
    %v1063 = vsel %vm417, %v918, 0
    %v1066 = vsel %vm926, %v408, 0
    %1068 = vmatprep.subr.bf16.mxu0 0
    %1069 = vmatpush1.bf16.msra.mxu0 %v1066
    %1070 = vmatprep.subr.bf16.mxu0 0
    %1071 = vmatpush1.bf16.msra.mxu0 0
    %1072 = vmatprep.subr.bf16.mxu0 0
    %1073 = vmatpush1.bf16.msra.mxu0 0
    %1074 = vmatprep.subr.bf16.mxu0 0
    %1075 = vmatpush1.bf16.msra.mxu0 0
    %1076 = vmatprep.subr.bf16.mxu0 0
    %1077 = vmatpush1.bf16.msra.mxu0 0
    %1078 = vmatprep.subr.bf16.mxu0 0
    %1079 = vmatpush1.bf16.msra.mxu0 0
    %1080 = vmatprep.subr.bf16.mxu0 0
    %1081 = vmatpush1.bf16.msra.mxu0 0
    %1082 = vmatprep.subr.bf16.mxu0 0
    %1083 = vmatpush1.bf16.msra.mxu0 0
    %1084 = vmatprep.subr.bf16.mxu0 0
    %1085 = vmatpush1.bf16.msra.mxu0 0
    %1086 = vmatprep.subr.bf16.mxu0 0
    %1087 = vmatpush1.bf16.msra.mxu0 0
    %1088 = vmatprep.subr.bf16.mxu0 0
    %1089 = vmatpush1.bf16.msra.mxu0 0
    %1090 = vmatprep.subr.bf16.mxu0 0
    %1091 = vmatpush1.bf16.msra.mxu0 0
    %1092 = vmatprep.subr.bf16.mxu0 0
    %1093 = vmatpush1.bf16.msra.mxu0 0
    %1094 = vmatprep.subr.bf16.mxu0 0
    %1095 = vmatpush1.bf16.msra.mxu0 0
    %1096 = vmatprep.subr.bf16.mxu0 0
    %1097 = vmatpush1.bf16.msra.mxu0 0
    %1098 = vmatprep.subr.bf16.mxu0 0
    %1099 = vmatpush1.bf16.msra.mxu0 0
    %1100 = vmatprep.mubr.bf16.mxu0 0
    %1101 = vmatmul.mubr.bf16.gmra.mrb[0].mxu0 %v1063
    %v1102 = vpop.f32.mrb[0].mxu0
    %v1103 = vadd.f32 0.0, %v1102
    %v1104 = vpop.f32.mrb[0].mxu0
    %v1105 = vpop.f32.mrb[0].mxu0
    %v1106 = vpop.f32.mrb[0].mxu0
    %1107 = vdwg.mxu0
    %v1109 = vsel %vm417, %v919, 0
    %v1112 = vsel %vm926, %v410, 0
    %1114 = vmatprep.subr.bf16.mxu0 0
    %1115 = vmatpush1.bf16.msra.mxu0 %v1112
    %1116 = vmatprep.subr.bf16.mxu0 0
    %1117 = vmatpush1.bf16.msra.mxu0 0
    %1118 = vmatprep.subr.bf16.mxu0 0
    %1119 = vmatpush1.bf16.msra.mxu0 0
    %1120 = vmatprep.subr.bf16.mxu0 0
    %1121 = vmatpush1.bf16.msra.mxu0 0
    %1122 = vmatprep.subr.bf16.mxu0 0
    %1123 = vmatpush1.bf16.msra.mxu0 0
    %1124 = vmatprep.subr.bf16.mxu0 0
    %1125 = vmatpush1.bf16.msra.mxu0 0
    %1126 = vmatprep.subr.bf16.mxu0 0
    %1127 = vmatpush1.bf16.msra.mxu0 0
    %1128 = vmatprep.subr.bf16.mxu0 0
    %1129 = vmatpush1.bf16.msra.mxu0 0
    %1130 = vmatprep.subr.bf16.mxu0 0
    %1131 = vmatpush1.bf16.msra.mxu0 0
    %1132 = vmatprep.subr.bf16.mxu0 0
    %1133 = vmatpush1.bf16.msra.mxu0 0
    %1134 = vmatprep.subr.bf16.mxu0 0
    %1135 = vmatpush1.bf16.msra.mxu0 0
    %1136 = vmatprep.subr.bf16.mxu0 0
    %1137 = vmatpush1.bf16.msra.mxu0 0
    %1138 = vmatprep.subr.bf16.mxu0 0
    %1139 = vmatpush1.bf16.msra.mxu0 0
    %1140 = vmatprep.subr.bf16.mxu0 0
    %1141 = vmatpush1.bf16.msra.mxu0 0
    %1142 = vmatprep.subr.bf16.mxu0 0
    %1143 = vmatpush1.bf16.msra.mxu0 0
    %1144 = vmatprep.subr.bf16.mxu0 0
    %1145 = vmatpush1.bf16.msra.mxu0 0
    %1146 = vmatprep.mubr.bf16.mxu0 0
    %1147 = vmatmul.mubr.bf16.gmra.mrb[0].mxu0 %v1109
    %v1148 = vpop.f32.mrb[0].mxu0
    %v1149 = vadd.f32 0.0, %v1148
    %v1150 = vpop.f32.mrb[0].mxu0
    %v1151 = vpop.f32.mrb[0].mxu0
    %v1152 = vpop.f32.mrb[0].mxu0
    %1153 = vdwg.mxu0
    %v1155 = vsel %vm417, %v920, 0
    %v1158 = vsel %vm926, %v412, 0
    %1160 = vmatprep.subr.bf16.mxu0 0
    %1161 = vmatpush1.bf16.msra.mxu0 %v1158
    %1162 = vmatprep.subr.bf16.mxu0 0
    %1163 = vmatpush1.bf16.msra.mxu0 0
    %1164 = vmatprep.subr.bf16.mxu0 0
    %1165 = vmatpush1.bf16.msra.mxu0 0
    %1166 = vmatprep.subr.bf16.mxu0 0
    %1167 = vmatpush1.bf16.msra.mxu0 0
    %1168 = vmatprep.subr.bf16.mxu0 0
    %1169 = vmatpush1.bf16.msra.mxu0 0
    %1170 = vmatprep.subr.bf16.mxu0 0
    %1171 = vmatpush1.bf16.msra.mxu0 0
    %1172 = vmatprep.subr.bf16.mxu0 0
    %1173 = vmatpush1.bf16.msra.mxu0 0
    %1174 = vmatprep.subr.bf16.mxu0 0
    %1175 = vmatpush1.bf16.msra.mxu0 0
    %1176 = vmatprep.subr.bf16.mxu0 0
    %1177 = vmatpush1.bf16.msra.mxu0 0
    %1178 = vmatprep.subr.bf16.mxu0 0
    %1179 = vmatpush1.bf16.msra.mxu0 0
    %1180 = vmatprep.subr.bf16.mxu0 0
    %1181 = vmatpush1.bf16.msra.mxu0 0
    %1182 = vmatprep.subr.bf16.mxu0 0
    %1183 = vmatpush1.bf16.msra.mxu0 0
    %1184 = vmatprep.subr.bf16.mxu0 0
    %1185 = vmatpush1.bf16.msra.mxu0 0
    %1186 = vmatprep.subr.bf16.mxu0 0
    %1187 = vmatpush1.bf16.msra.mxu0 0
    %1188 = vmatprep.subr.bf16.mxu0 0
    %1189 = vmatpush1.bf16.msra.mxu0 0
    %1190 = vmatprep.subr.bf16.mxu0 0
    %1191 = vmatpush1.bf16.msra.mxu0 0
    %1192 = vmatprep.mubr.bf16.mxu0 0
    %1193 = vmatmul.mubr.bf16.gmra.mrb[0].mxu0 %v1155
    %v1194 = vpop.f32.mrb[0].mxu0
    %v1195 = vadd.f32 0.0, %v1194
    %v1196 = vpop.f32.mrb[0].mxu0
    %v1197 = vpop.f32.mrb[0].mxu0
    %v1198 = vpop.f32.mrb[0].mxu0
    %1199 = vdwg.mxu0
    %v1201 = vsel %vm417, %v921, 0
    %v1204 = vsel %vm926, %v414, 0
    %1206 = vmatprep.subr.bf16.mxu0 0
    %1207 = vmatpush1.bf16.msra.mxu0 %v1204
    %1208 = vmatprep.subr.bf16.mxu0 0
    %1209 = vmatpush1.bf16.msra.mxu0 0
    %1210 = vmatprep.subr.bf16.mxu0 0
    %1211 = vmatpush1.bf16.msra.mxu0 0
    %1212 = vmatprep.subr.bf16.mxu0 0
    %1213 = vmatpush1.bf16.msra.mxu0 0
    %1214 = vmatprep.subr.bf16.mxu0 0
    %1215 = vmatpush1.bf16.msra.mxu0 0
    %1216 = vmatprep.subr.bf16.mxu0 0
    %1217 = vmatpush1.bf16.msra.mxu0 0
    %1218 = vmatprep.subr.bf16.mxu0 0
    %1219 = vmatpush1.bf16.msra.mxu0 0
    %1220 = vmatprep.subr.bf16.mxu0 0
    %1221 = vmatpush1.bf16.msra.mxu0 0
    %1222 = vmatprep.subr.bf16.mxu0 0
    %1223 = vmatpush1.bf16.msra.mxu0 0
    %1224 = vmatprep.subr.bf16.mxu0 0
    %1225 = vmatpush1.bf16.msra.mxu0 0
    %1226 = vmatprep.subr.bf16.mxu0 0
    %1227 = vmatpush1.bf16.msra.mxu0 0
    %1228 = vmatprep.subr.bf16.mxu0 0
    %1229 = vmatpush1.bf16.msra.mxu0 0
    %1230 = vmatprep.subr.bf16.mxu0 0
    %1231 = vmatpush1.bf16.msra.mxu0 0
    %1232 = vmatprep.subr.bf16.mxu0 0
    %1233 = vmatpush1.bf16.msra.mxu0 0
    %1234 = vmatprep.subr.bf16.mxu0 0
    %1235 = vmatpush1.bf16.msra.mxu0 0
    %1236 = vmatprep.subr.bf16.mxu0 0
    %1237 = vmatpush1.bf16.msra.mxu0 0
    %1238 = vmatprep.mubr.bf16.mxu0 0
    %1239 = vmatmul.mubr.bf16.gmra.mrb[0].mxu0 %v1201
    %v1240 = vpop.f32.mrb[0].mxu0
    %v1241 = vadd.f32 0.0, %v1240
    %v1242 = vpop.f32.mrb[0].mxu0
    %v1243 = vpop.f32.mrb[0].mxu0
    %v1244 = vpop.f32.mrb[0].mxu0
    %1245 = vdwg.mxu0
    %v1247 = vsel %vm417, %v922, 0
    %v1250 = vsel %vm926, %v416, 0
    %1252 = vmatprep.subr.bf16.mxu0 0
    %1253 = vmatpush1.bf16.msra.mxu0 %v1250
    %1254 = vmatprep.subr.bf16.mxu0 0
    %1255 = vmatpush1.bf16.msra.mxu0 0
    %1256 = vmatprep.subr.bf16.mxu0 0
    %1257 = vmatpush1.bf16.msra.mxu0 0
    %1258 = vmatprep.subr.bf16.mxu0 0
    %1259 = vmatpush1.bf16.msra.mxu0 0
    %1260 = vmatprep.subr.bf16.mxu0 0
    %1261 = vmatpush1.bf16.msra.mxu0 0
    %1262 = vmatprep.subr.bf16.mxu0 0
    %1263 = vmatpush1.bf16.msra.mxu0 0
    %1264 = vmatprep.subr.bf16.mxu0 0
    %1265 = vmatpush1.bf16.msra.mxu0 0
    %1266 = vmatprep.subr.bf16.mxu0 0
    %1267 = vmatpush1.bf16.msra.mxu0 0
    %1268 = vmatprep.subr.bf16.mxu0 0
    %1269 = vmatpush1.bf16.msra.mxu0 0
    %1270 = vmatprep.subr.bf16.mxu0 0
    %1271 = vmatpush1.bf16.msra.mxu0 0
    %1272 = vmatprep.subr.bf16.mxu0 0
    %1273 = vmatpush1.bf16.msra.mxu0 0
    %1274 = vmatprep.subr.bf16.mxu0 0
    %1275 = vmatpush1.bf16.msra.mxu0 0
    %1276 = vmatprep.subr.bf16.mxu0 0
    %1277 = vmatpush1.bf16.msra.mxu0 0
    %1278 = vmatprep.subr.bf16.mxu0 0
    %1279 = vmatpush1.bf16.msra.mxu0 0
    %1280 = vmatprep.subr.bf16.mxu0 0
    %1281 = vmatpush1.bf16.msra.mxu0 0
    %1282 = vmatprep.subr.bf16.mxu0 0
    %1283 = vmatpush1.bf16.msra.mxu0 0
    %1284 = vmatprep.mubr.bf16.mxu0 0
    %1285 = vmatmul.mubr.bf16.gmra.mrb[0].mxu0 %v1247
    %v1286 = vpop.f32.mrb[0].mxu0
    %v1287 = vadd.f32 0.0, %v1286
    %v1288 = vpop.f32.mrb[0].mxu0
    %v1289 = vpop.f32.mrb[0].mxu0
    %v1290 = vpop.f32.mrb[0].mxu0
    %1291 = vdwg.mxu0
    %1294 = vrot.lane.b32.xlu0 %v1057, 8
    %v1295 = vpop.permute.xlu0 %1294
    %1296 = vrot.lane.b32.xlu0 %v1103, 8
    %v1297 = vpop.permute.xlu0 %1296
    %1302 = vrot.lane.b32.xlu0 %v1149, 16
    %v1303 = vpop.permute.xlu0 %1302
    %1304 = vrot.lane.b32.xlu0 %v1195, 16
    %v1305 = vpop.permute.xlu0 %1304
    %1310 = vrot.lane.b32.xlu0 %v1241, 24
    %v1311 = vpop.permute.xlu0 %1310
    %1312 = vrot.lane.b32.xlu0 %v1287, 24
    %v1313 = vpop.permute.xlu0 %1312
    %v1316 = vsel %vm417, %v965, %v1295
    %v1317 = vsel %vm417, %v1011, %v1297
    %vm1318 = vcmask 130048
    %v1319 = vsel %vm1318, %v1316, %v1303
    %v1320 = vsel %vm1318, %v1317, %v1305
    %vm1321 = vcmask 195584
    %v1322 = vsel %vm1321, %v1319, %v1311
    %v1323 = vsel %vm1321, %v1320, %v1313
    %v1324 = vpack.c.bf16 %v1323, %v1322
    %v1325 = vld [vmem:[#allocation10] sm:$0xf]
    %v1326 = vld [vmem:[#allocation10 + $0x4] sm:$0xf]
    %v1327 = vld [vmem:[#allocation10 + $0x8] sm:$0xf]
    %v1328 = vld [vmem:[#allocation10 + $0xc] sm:$0xf]
    %v1329 = vld [vmem:[#allocation11] sm:$0x1]
    %v1331 = vlaneseq
    %v1332 = vshrl.u32 %v1331, 7
    %v1333 = vsub.s32 0, %v1332
    %v1334 = vrot.slane %v1329, %v1333
    %v1340 = vunpack.c.l.b16 %v1325
    %v1341 = vunpack.c.l.b16 %v1326
    %v1342 = vunpack.c.l.b16 %v1327
    %v1343 = vunpack.c.l.b16 %v1328
    %v1344 = vpack.c.b16 %v1341, %v1340
    %v1345 = vpack.c.b16 %v1343, %v1342
    %v1349 = vsel %vm255, %v1324, 0
    %1351 = vmatprep.subr.bf16.mxu0 0
    %1352 = vmatpush1.bf16.msra.mxu0 %v1344
    %1353 = vmatprep.subr.bf16.mxu0 0
    %1354 = vmatpush1.bf16.msra.mxu0 %v1345
    %1355 = vmatprep.subr.bf16.mxu0 0
    %1356 = vmatpush1.bf16.msra.mxu0 0
    %1357 = vmatprep.subr.bf16.mxu0 0
    %1358 = vmatpush1.bf16.msra.mxu0 0
    %1359 = vmatprep.subr.bf16.mxu0 0
    %1360 = vmatpush1.bf16.msra.mxu0 0
    %1361 = vmatprep.subr.bf16.mxu0 0
    %1362 = vmatpush1.bf16.msra.mxu0 0
    %1363 = vmatprep.subr.bf16.mxu0 0
    %1364 = vmatpush1.bf16.msra.mxu0 0
    %1365 = vmatprep.subr.bf16.mxu0 0
    %1366 = vmatpush1.bf16.msra.mxu0 0
    %1367 = vmatprep.subr.bf16.mxu0 0
    %1368 = vmatpush1.bf16.msra.mxu0 0
    %1369 = vmatprep.subr.bf16.mxu0 0
    %1370 = vmatpush1.bf16.msra.mxu0 0
    %1371 = vmatprep.subr.bf16.mxu0 0
    %1372 = vmatpush1.bf16.msra.mxu0 0
    %1373 = vmatprep.subr.bf16.mxu0 0
    %1374 = vmatpush1.bf16.msra.mxu0 0
    %1375 = vmatprep.subr.bf16.mxu0 0
    %1376 = vmatpush1.bf16.msra.mxu0 0
    %1377 = vmatprep.subr.bf16.mxu0 0
    %1378 = vmatpush1.bf16.msra.mxu0 0
    %1379 = vmatprep.subr.bf16.mxu0 0
    %1380 = vmatpush1.bf16.msra.mxu0 0
    %1381 = vmatprep.subr.bf16.mxu0 0
    %1382 = vmatpush1.bf16.msra.mxu0 0
    %1383 = vmatprep.mubr.bf16.mxu0 0
    %1384 = vmatmul.mubr.bf16.gmra.mrb[0].mxu0 %v1349
    %v1385 = vpop.f32.mrb[0].mxu0
    %v1386 = vadd.f32 %v1334, %v1385
    %v1387 = vpop.f32.mrb[0].mxu0
    %v1388 = vpop.f32.mrb[0].mxu0
    %v1389 = vadd.f32 %v1334, %v1388
    %v1390 = vpop.f32.mrb[0].mxu0
    %1391 = vdwg.mxu0
    %v1392 = vadd.f32 %v251, %v1386
    %v1393 = vadd.f32 %v252, %v1389
    %v1394 = vld [vmem:[#allocation16] sm:$0x1]
    %v1395 = vld [vmem:[#allocation17] sm:$0x1]
    %v1396 = vsel %vm255, %v1392, 0.0
    %1397 = vadd.xlane.f32.xlu0 %v1396
    %v1398 = vpop.xlane.xlu0 %1397
    %v1399 = vsel %vm255, %v1393, 0.0
    %1400 = vadd.xlane.f32.xlu0 %v1399
    %v1401 = vpop.xlane.xlu0 %1400
    %v1402 = vmul.f32 %v1398, %v262
    %v1403 = vmul.f32 %v1401, %v262
    %v1404 = vsub.f32 %v1392, %v1402
    %v1405 = vsub.f32 %v1393, %v1403
    %v1406 = vmul.f32 %v1404, %v1404
    %v1407 = vmul.f32 %v1405, %v1405
    %v1408 = vsel %vm255, %v1406, 0.0
    %1409 = vadd.xlane.f32.xlu0 %v1408
    %v1410 = vpop.xlane.xlu0 %1409
    %v1411 = vsel %vm255, %v1407, 0.0
    %1412 = vadd.xlane.f32.xlu0 %v1411
    %v1413 = vpop.xlane.xlu0 %1412
    %v1414 = vmul.f32 %v1410, %v262
    %v1415 = vmul.f32 %v1413, %v262
    %v1416 = vadd.f32 %v1414, 1e-12
    %v1417 = vadd.f32 %v1415, 1e-12
    %v1418 = vrsqrt.pop %v1416
    %v1419 = vrsqrt.pop %v1417
    %v1420 = vmul.f32 %v1404, %v1418
    %v1421 = vmul.f32 %v1405, %v1419
    %v1423 = vlaneseq
    %v1424 = vshrl.u32 %v1423, 7
    %v1425 = vsub.s32 0, %v1424
    %v1426 = vrot.slane %v1394, %v1425
    %v1428 = vmul.f32 %v1420, %v1426
    %v1429 = vmul.f32 %v1421, %v1426
    %v1431 = vlaneseq
    %v1432 = vshrl.u32 %v1431, 7
    %v1433 = vsub.s32 0, %v1432
    %v1434 = vrot.slane %v1395, %v1433
    %v1436 = vadd.f32 %v1428, %v1434
    %v1437 = vadd.f32 %v1429, %v1434
    %v1438 = vpack.c.bf16 %v1437, %v1436
    %v1439 = vld [vmem:[#allocation19] sm:$0xf]
    %v1440 = vld [vmem:[#allocation19 + $0x4] sm:$0xf]
    %v1441 = vld [vmem:[#allocation19 + $0x8] sm:$0xf]
    %v1442 = vld [vmem:[#allocation19 + $0xc] sm:$0xf]
    %v1443 = vld [vmem:[#allocation20] sm:$0x1]
    %v1445 = vlaneseq
    %v1446 = vshrl.u32 %v1445, 7
    %v1447 = vsub.s32 0, %v1446
    %v1448 = vrot.slane %v1443, %v1447
    %v1454 = vunpack.c.l.b16 %v1439
    %v1455 = vunpack.c.l.b16 %v1440
    %v1456 = vunpack.c.l.b16 %v1441
    %v1457 = vunpack.c.l.b16 %v1442
    %v1458 = vpack.c.b16 %v1455, %v1454
    %v1459 = vpack.c.b16 %v1457, %v1456
    %v1463 = vsel %vm255, %v1438, 0
    %1465 = vmatprep.subr.bf16.mxu0 0
    %1466 = vmatpush1.bf16.msra.mxu0 %v1458
    %1467 = vmatprep.subr.bf16.mxu0 0
    %1468 = vmatpush1.bf16.msra.mxu0 %v1459
    %1469 = vmatprep.subr.bf16.mxu0 0
    %1470 = vmatpush1.bf16.msra.mxu0 0
    %1471 = vmatprep.subr.bf16.mxu0 0
    %1472 = vmatpush1.bf16.msra.mxu0 0
    %1473 = vmatprep.subr.bf16.mxu0 0
    %1474 = vmatpush1.bf16.msra.mxu0 0
    %1475 = vmatprep.subr.bf16.mxu0 0
    %1476 = vmatpush1.bf16.msra.mxu0 0
    %1477 = vmatprep.subr.bf16.mxu0 0
    %1478 = vmatpush1.bf16.msra.mxu0 0
    %1479 = vmatprep.subr.bf16.mxu0 0
    %1480 = vmatpush1.bf16.msra.mxu0 0
    %1481 = vmatprep.subr.bf16.mxu0 0
    %1482 = vmatpush1.bf16.msra.mxu0 0
    %1483 = vmatprep.subr.bf16.mxu0 0
    %1484 = vmatpush1.bf16.msra.mxu0 0
    %1485 = vmatprep.subr.bf16.mxu0 0
    %1486 = vmatpush1.bf16.msra.mxu0 0
    %1487 = vmatprep.subr.bf16.mxu0 0
    %1488 = vmatpush1.bf16.msra.mxu0 0
    %1489 = vmatprep.subr.bf16.mxu0 0
    %1490 = vmatpush1.bf16.msra.mxu0 0
    %1491 = vmatprep.subr.bf16.mxu0 0
    %1492 = vmatpush1.bf16.msra.mxu0 0
    %1493 = vmatprep.subr.bf16.mxu0 0
    %1494 = vmatpush1.bf16.msra.mxu0 0
    %1495 = vmatprep.subr.bf16.mxu0 0
    %1496 = vmatpush1.bf16.msra.mxu0 0
    %1497 = vmatprep.mubr.bf16.mxu0 0
    %1498 = vmatmul.mubr.bf16.gmra.mrb[0].mxu0 %v1463
    %v1499 = vpop.f32.mrb[0].mxu0
    %v1500 = vadd.f32 %v1448, %v1499
    %v1501 = vpop.f32.mrb[0].mxu0
    %v1502 = vpop.f32.mrb[0].mxu0
    %v1503 = vadd.f32 %v1448, %v1502
    %v1504 = vpop.f32.mrb[0].mxu0
    %1505 = vdwg.mxu0
    %v1506 = vmax.f32 %v1500, 0.0
    %v1507 = vmax.f32 %v1503, 0.0
    %v1508 = vpack.c.bf16 %v1507, %v1506
    %v1509 = vld [vmem:[#allocation22] sm:$0xf]
    %v1510 = vld [vmem:[#allocation22 + $0x4] sm:$0xf]
    %v1511 = vld [vmem:[#allocation22 + $0x8] sm:$0xf]
    %v1512 = vld [vmem:[#allocation22 + $0xc] sm:$0xf]
    %v1513 = vld [vmem:[#allocation22 + $0x10] sm:$0xf]
    %v1514 = vld [vmem:[#allocation22 + $0x14] sm:$0xf]
    %v1515 = vld [vmem:[#allocation22 + $0x18] sm:$0xf]
    %v1516 = vld [vmem:[#allocation22 + $0x1c] sm:$0xf]
    %v1517 = vld [vmem:[#allocation22 + $0x20] sm:$0xf]
    %v1518 = vld [vmem:[#allocation22 + $0x24] sm:$0xf]
    %v1519 = vld [vmem:[#allocation22 + $0x28] sm:$0xf]
    %v1520 = vld [vmem:[#allocation22 + $0x2c] sm:$0xf]
    %v1521 = vld [vmem:[#allocation22 + $0x30] sm:$0xf]
    %v1522 = vld [vmem:[#allocation22 + $0x34] sm:$0xf]
    %v1523 = vld [vmem:[#allocation22 + $0x38] sm:$0xf]
    %v1524 = vld [vmem:[#allocation22 + $0x3c] sm:$0xf]
    %v1525 = vld [vmem:[#allocation23] sm:$0x1]
    %v1527 = vlaneseq
    %v1528 = vshrl.u32 %v1527, 7
    %v1529 = vsub.s32 0, %v1528
    %v1530 = vrot.slane %v1525, %v1529
    %v1548 = vunpack.c.l.b16 %v1509
    %v1549 = vunpack.c.l.b16 %v1510
    %v1550 = vunpack.c.l.b16 %v1511
    %v1551 = vunpack.c.l.b16 %v1512
    %v1552 = vunpack.c.l.b16 %v1513
    %v1553 = vunpack.c.l.b16 %v1514
    %v1554 = vunpack.c.l.b16 %v1515
    %v1555 = vunpack.c.l.b16 %v1516
    %v1556 = vunpack.c.l.b16 %v1517
    %v1557 = vunpack.c.l.b16 %v1518
    %v1558 = vunpack.c.l.b16 %v1519
    %v1559 = vunpack.c.l.b16 %v1520
    %v1560 = vunpack.c.l.b16 %v1521
    %v1561 = vunpack.c.l.b16 %v1522
    %v1562 = vunpack.c.l.b16 %v1523
    %v1563 = vunpack.c.l.b16 %v1524
    %v1564 = vpack.c.b16 %v1549, %v1548
    %v1565 = vpack.c.b16 %v1551, %v1550
    %v1566 = vpack.c.b16 %v1553, %v1552
    %v1567 = vpack.c.b16 %v1555, %v1554
    %v1568 = vpack.c.b16 %v1557, %v1556
    %v1569 = vpack.c.b16 %v1559, %v1558
    %v1570 = vpack.c.b16 %v1561, %v1560
    %v1571 = vpack.c.b16 %v1563, %v1562
    %1580 = vmatprep.subr.bf16.mxu0 0
    %1581 = vmatpush1.bf16.msra.mxu0 %v1564
    %1582 = vmatprep.subr.bf16.mxu0 0
    %1583 = vmatpush1.bf16.msra.mxu0 %v1565
    %1584 = vmatprep.subr.bf16.mxu0 0
    %1585 = vmatpush1.bf16.msra.mxu0 %v1566
    %1586 = vmatprep.subr.bf16.mxu0 0
    %1587 = vmatpush1.bf16.msra.mxu0 %v1567
    %1588 = vmatprep.subr.bf16.mxu0 0
    %1589 = vmatpush1.bf16.msra.mxu0 %v1568
    %1590 = vmatprep.subr.bf16.mxu0 0
    %1591 = vmatpush1.bf16.msra.mxu0 %v1569
    %1592 = vmatprep.subr.bf16.mxu0 0
    %1593 = vmatpush1.bf16.msra.mxu0 %v1570
    %1594 = vmatprep.subr.bf16.mxu0 0
    %1595 = vmatpush1.bf16.msra.mxu0 %v1571
    %1596 = vmatprep.subr.bf16.mxu0 0
    %1597 = vmatpush1.bf16.msra.mxu0 0
    %1598 = vmatprep.subr.bf16.mxu0 0
    %1599 = vmatpush1.bf16.msra.mxu0 0
    %1600 = vmatprep.subr.bf16.mxu0 0
    %1601 = vmatpush1.bf16.msra.mxu0 0
    %1602 = vmatprep.subr.bf16.mxu0 0
    %1603 = vmatpush1.bf16.msra.mxu0 0
    %1604 = vmatprep.subr.bf16.mxu0 0
    %1605 = vmatpush1.bf16.msra.mxu0 0
    %1606 = vmatprep.subr.bf16.mxu0 0
    %1607 = vmatpush1.bf16.msra.mxu0 0
    %1608 = vmatprep.subr.bf16.mxu0 0
    %1609 = vmatpush1.bf16.msra.mxu0 0
    %1610 = vmatprep.subr.bf16.mxu0 0
    %1611 = vmatpush1.bf16.msra.mxu0 0
    %1612 = vmatprep.mubr.bf16.mxu0 0
    %1613 = vmatmul.mubr.bf16.gmra.mrb[0].mxu0 %v1508
    %v1614 = vpop.f32.mrb[0].mxu0
    %v1615 = vadd.f32 %v1530, %v1614
    %v1616 = vpop.f32.mrb[0].mxu0
    %v1617 = vpop.f32.mrb[0].mxu0
    %v1618 = vadd.f32 %v1530, %v1617
    %v1619 = vpop.f32.mrb[0].mxu0
    %1620 = vdwg.mxu0
    %v1621 = vadd.f32 %v1392, %v1615
    %v1622 = vadd.f32 %v1393, %v1618
    %v1623 = vld [vmem:[#allocation25] sm:$0x1]
    %v1624 = vld [vmem:[#allocation26] sm:$0x1]
    %v1625 = vsel %vm255, %v1621, 0.0
    %1626 = vadd.xlane.f32.xlu0 %v1625
    %v1627 = vpop.xlane.xlu0 %1626
    %v1628 = vsel %vm255, %v1622, 0.0
    %1629 = vadd.xlane.f32.xlu0 %v1628
    %v1630 = vpop.xlane.xlu0 %1629
    %v1631 = vmul.f32 %v1627, %v262
    %v1632 = vmul.f32 %v1630, %v262
    %v1633 = vsub.f32 %v1621, %v1631
    %v1634 = vsub.f32 %v1622, %v1632
    %v1635 = vmul.f32 %v1633, %v1633
    %v1636 = vmul.f32 %v1634, %v1634
    %v1637 = vsel %vm255, %v1635, 0.0
    %1638 = vadd.xlane.f32.xlu0 %v1637
    %v1639 = vpop.xlane.xlu0 %1638
    %v1640 = vsel %vm255, %v1636, 0.0
    %1641 = vadd.xlane.f32.xlu0 %v1640
    %v1642 = vpop.xlane.xlu0 %1641
    %v1643 = vmul.f32 %v1639, %v262
    %v1644 = vmul.f32 %v1642, %v262
    %v1645 = vadd.f32 %v1643, 1e-12
    %v1646 = vadd.f32 %v1644, 1e-12
    %v1647 = vrsqrt.pop %v1645
    %v1648 = vrsqrt.pop %v1646
    %v1649 = vmul.f32 %v1633, %v1647
    %v1650 = vmul.f32 %v1634, %v1648
    %v1652 = vlaneseq
    %v1653 = vshrl.u32 %v1652, 7
    %v1654 = vsub.s32 0, %v1653
    %v1655 = vrot.slane %v1623, %v1654
    %v1657 = vmul.f32 %v1649, %v1655
    %v1658 = vmul.f32 %v1650, %v1655
    %v1660 = vlaneseq
    %v1661 = vshrl.u32 %v1660, 7
    %v1662 = vsub.s32 0, %v1661
    %v1663 = vrot.slane %v1624, %v1662
    %v1665 = vadd.f32 %v1657, %v1663
    %v1666 = vadd.f32 %v1658, %v1663
    %1667 = vst.msk [vmem:[#allocation28] sm:$0xff] %vm255, %v1665
    %1668 = vst.msk [vmem:[#allocation28 + $0x8] sm:$0xff] %vm255, %v1666
    // Predicated region
    $region130: #{tpu_custom_call.1} parent=1 // pred_check
      _
    $region131: #{tpu_custom_call.1} parent=1 // pred_check_branch
      %1670 = sbr.rel (0) target = $region133
    $region132: #{tpu_custom_call.1} parent=1 // pred_region
      %s1672 = ssub.s32 256, 256
      %1673 = vsyncadd [#allocation4], %s1672
      %s1674 = sshll.u32 [#allocation28], 4
      %s1675 = int_to_ptr.vmem [resolvable:$true] %s1674
      %1680 = dma.vmem_to_hbm [thread:$0]  %s1675, 256, %s16, [#allocation4], 128, 128, 8
    $region133: #{tpu_custom_call.1} parent=1 // pred_fallthru
      _
    // Predicated region
    $region134: #{tpu_custom_call.1} parent=1 // pred_check
      _
    $region135: #{tpu_custom_call.1} parent=1 // pred_check_branch
      %1682 = sbr.rel (0) target = $region137
    $region136: #{tpu_custom_call.1} parent=1 // pred_region
      %1683 = dma.done [#allocation4], 256
    $region137: #{tpu_custom_call.1} parent=1 // pred_fallthru
      _
    %1684 = vsyncpa [#allocation3], 1
    %1685 = vsyncpa [#allocation6], 1
    %1686 = vsyncpa [#allocation9], 1
    %1687 = vsyncpa [#allocation12], 1
    %1688 = vsyncpa [#allocation15], 1
    %1689 = vsyncpa [#allocation18], 1
    %1690 = vsyncpa [#allocation21], 1
    %1691 = vsyncpa [#allocation24], 1
    %1692 = vsyncpa [#allocation27], 1
    %1693 = vsyncpa [#allocation4], 1

</llo_original>
